<compile_context>
chip_gen: v6e
topology: v6e:2x2x1
jax: 0.10.0
libtpu: 0.0.40
codegen_flags: <defaults>
</compile_context>

<pallas_src>
import math

import jax
import jax.numpy as jnp
from jax.experimental import pallas as pl
from jax.experimental.pallas import tpu as pltpu

LN_EPS = 1e-5     # torch.nn.LayerNorm default eps
L2_EPS = 1e-12    # torch F.normalize default eps


# ---------------------------------------------------------------------------
# math helpers (used both inside the kernel and in the pure-JAX reference)
# ---------------------------------------------------------------------------
def _swish(v):
    return v * jax.nn.sigmoid(v)


def _layernorm(v, g, b):
    mu = jnp.mean(v, axis=-1, keepdims=True)
    var = jnp.mean(jnp.square(v - mu), axis=-1, keepdims=True)
    return (v - mu) * jax.lax.rsqrt(var + LN_EPS) * g + b


def _linear(v, w, b):
    return jnp.dot(v, w, preferred_element_type=jnp.float32) + b


# ---------------------------------------------------------------------------
# Pallas kernel: the entire DiffusionMLP forward
# ---------------------------------------------------------------------------
def diffusion_mlp_kernel(x_ref, t_ref, cond_ref, table_ref, w_ref, v_ref, out_ref):
    B, D = x_ref.shape
    H = w_ref.shape[1]          # weight slab width == hidden_dim
    T_pad = table_ref.shape[0]

    # Lazy static views into the packed parameter slabs (loaded at point of use).
    def W(r0, k, n):
        return w_ref[r0:r0 + k, 0:n]

    def V(i, n):
        return v_ref[i:i + 1, 0:n]           # (1, n) -> broadcasts over batch

    x = x_ref[...]
    cond = cond_ref[...]

    # --- cond = F.normalize(cond, p=2, dim=1) ---
    nrm = jnp.sqrt(jnp.sum(cond * cond, axis=-1, keepdims=True))
    cond = cond / jnp.maximum(nrm, L2_EPS)

    # --- nn.Embedding(t) done in-kernel as a one-hot matmul on the MXU ---
    tt = t_ref[...]                                           # (B, 1) int32
    iota = jax.lax.broadcasted_iota(jnp.int32, (B, T_pad), 1)
    onehot = (iota == tt).astype(jnp.float32)                 # (B, T_pad)
    temb_in = jnp.dot(onehot, table_ref[...],
                      preferred_element_type=jnp.float32)     # (B, D)

    # --- TimeEmbedding tail: Linear(D,H) -> Swish -> Linear(H,H) ---
    temb = _linear(_swish(_linear(temb_in, W(0, D, H), V(0, H))),
                   W(D, H, H), V(1, H))
    # --- cond_embedding: LayerNorm(D) -> Swish -> Linear(D,H) ---
    cemb = _linear(_swish(_layernorm(cond, V(2, D), V(3, D))),
                   W(D + H, D, H), V(4, H))

    # Hoisted, x-independent: temb_proj(temb) + cond_proj(cemb) per block,
    # each computed as ONE (B,2H)x(2H,H) matmul (weights stacked row-wise).
    stc = jnp.concatenate([_swish(temb), _swish(cemb)], axis=-1)      # (B, 2H)
    r_tc1 = 2 * D + H
    r_tc2 = r_tc1 + 2 * H
    add1 = jnp.dot(stc, W(r_tc1, 2 * H, H), preferred_element_type=jnp.float32)
    add2 = jnp.dot(stc, W(r_tc2, 2 * H, H), preferred_element_type=jnp.float32)

    r_blk1 = r_tc2 + 2 * H
    r_blk2 = r_blk1 + D + (H + D)

    def bottleneck(xin, add, wr, vr):
        # blcok_in; temb_proj/cond_proj folded into the precomputed `add`
        # (biases b_in + b_t + b_c pre-summed host-side into one vector row).
        a = _swish(_layernorm(xin, V(vr + 0, D), V(vr + 1, D)))
        h = jnp.dot(a, W(wr, D, H), preferred_element_type=jnp.float32) \
            + V(vr + 2, H) + add
        # TODO(synk): nn.Dropout(0.2) is implemented as eval-mode identity (no RNG drop).
        # Fused blcok_out + short_cut : single (B, H+D)x(H+D, D) matmul.
        b = _swish(_layernorm(h, V(vr + 3, H), V(vr + 4, H)))
        return _linear(jnp.concatenate([b, xin], axis=-1),
                       W(wr + D, H + D, D), V(vr + 5, D))

    h = bottleneck(x, add1, r_blk1, 5)      # block1
    h = bottleneck(h, add2, r_blk2, 11)     # block2
    out_ref[...] = h


# ---------------------------------------------------------------------------
# Glue: parameters, slab packing, embedding table, pallas_call wrapper
# ---------------------------------------------------------------------------
def time_embedding_table(T, d_model):
    assert d_model % 2 == 0
    emb = jnp.exp(-jnp.arange(0, d_model, 2, dtype=jnp.float32) / d_model
                  * math.log(10000.0))
    pos = jnp.arange(T, dtype=jnp.float32)
    emb = pos[:, None] * emb[None, :]                       # (T, d_model//2)
    emb = jnp.stack([jnp.sin(emb), jnp.cos(emb)], axis=-1)  # (T, d_model//2, 2)
    return emb.reshape(T, d_model)


def init_params(key, D, H):
    """Deterministic synthetic parameters, structured like the PyTorch module."""
    keys = iter(jax.random.split(key, 32))

    def rand_w(shape):
        s = 1.0 / math.sqrt(shape[0])
        return jax.random.uniform(next(keys), shape, jnp.float32, -s, s)

    def rand_b(n):
        return jax.random.uniform(next(keys), (n,), jnp.float32, -0.05, 0.05)

    ones = lambda n: jnp.ones((n,), jnp.float32)
    zeros = lambda n: jnp.zeros((n,), jnp.float32)

    p = {
        "te_w1": rand_w((D, H)), "te_b1": zeros(H),
        "te_w2": rand_w((H, H)), "te_b2": zeros(H),
        "ce_g": ones(D), "ce_b": zeros(D),
        "ce_w": rand_w((D, H)), "ce_bias": rand_b(H),
        "blocks": [],
    }
    for _ in range(2):
        p["blocks"].append({
            "ln_in_g": ones(D), "ln_in_b": zeros(D),
            "w_in": rand_w((D, H)), "b_in": rand_b(H),
            "w_t": rand_w((H, H)), "b_t": rand_b(H),
            "w_c": rand_w((H, H)), "b_c": rand_b(H),
            "ln_out_g": ones(H), "ln_out_b": zeros(H),
            "w_out": rand_w((H, D)), "b_out": rand_b(D),
            "w_sc": rand_w((D, D)), "b_sc": rand_b(D),
        })
    return p


def pack_params(p, D, H):
    """Pack all parameters into a weight slab (rows, H) and a vector slab (rows, H).

    Weight slab row layout (matches kernel offsets):
      [0, D)            te_w1
      [D, D+H)          te_w2
      [D+H, 2D+H)       ce_w
      [2D+H, +2H)       block1 [w_t ; w_c]       (for the hoisted add1 matmul)
      [.., +2H)         block2 [w_t ; w_c]       (add2)
      per block:  w_in (D rows), then [w_out ; w_sc] (H+D rows)
    """
    assert H >= D

    def padw(m):
        return jnp.pad(m, ((0, 0), (0, H - m.shape[1])))

    def padv(v):
        v = v.reshape(1, -1)
        return jnp.pad(v, ((0, 0), (0, H - v.shape[1])))

    b1, b2 = p["blocks"]
    wrows = [
        padw(p["te_w1"]), padw(p["te_w2"]), padw(p["ce_w"]),
        padw(jnp.concatenate([b1["w_t"], b1["w_c"]], axis=0)),
        padw(jnp.concatenate([b2["w_t"], b2["w_c"]], axis=0)),
    ]
    vrows = [padv(p["te_b1"]), padv(p["te_b2"]),
             padv(p["ce_g"]), padv(p["ce_b"]), padv(p["ce_bias"])]
    for blk in (b1, b2):
        wrows += [padw(blk["w_in"]),
                  padw(jnp.concatenate([blk["w_out"], blk["w_sc"]], axis=0))]
        vrows += [padv(blk["ln_in_g"]), padv(blk["ln_in_b"]),
                  padv(blk["b_in"] + blk["b_t"] + blk["b_c"]),
                  padv(blk["ln_out_g"]), padv(blk["ln_out_b"]),
                  padv(blk["b_out"] + blk["b_sc"])]
    return jnp.concatenate(wrows, axis=0), jnp.concatenate(vrows, axis=0)


def diffusion_mlp_forward(x, t, cond, wslab, vslab, table_padded):
    B, D = x.shape
    vspec = pl.BlockSpec(memory_space=pltpu.MemorySpace.VMEM)
    return pl.pallas_call(
        diffusion_mlp_kernel,
        out_shape=jax.ShapeDtypeStruct((B, D), jnp.float32),
        in_specs=[vspec] * 6,
        out_specs=vspec,
    )(x, t.reshape(B, 1).astype(jnp.int32), cond, table_padded, wslab, vslab)


# ---------------------------------------------------------------------------
# Pure-JAX reference (original unfused params, no Pallas) for validation
# ---------------------------------------------------------------------------
def reference_forward(x, t, cond, p, emb_table):
    nrm = jnp.sqrt(jnp.sum(cond * cond, axis=-1, keepdims=True))
    cond = cond / jnp.maximum(nrm, L2_EPS)
    temb_in = emb_table[t]

    temb = _swish(temb_in @ p["te_w1"] + p["te_b1"]) @ p["te_w2"] + p["te_b2"]
    cemb = _swish(_layernorm(cond, p["ce_g"], p["ce_b"])) @ p["ce_w"] + p["ce_bias"]

    h = x
    for blk in p["blocks"]:
        xin = h
        a = _swish(_layernorm(xin, blk["ln_in_g"], blk["ln_in_b"])) @ blk["w_in"] + blk["b_in"]
        a = a + _swish(temb) @ blk["w_t"] + blk["b_t"]
        a = a + _swish(cemb) @ blk["w_c"] + blk["b_c"]
        a = _swish(_layernorm(a, blk["ln_out_g"], blk["ln_out_b"])) @ blk["w_out"] + blk["b_out"]
        h = a + xin @ blk["w_sc"] + blk["b_sc"]
    return h


if __name__ == "__main__":
    B, D, H, T = 8, 16, 32, 100   # batch, input_dim(=output_dim), hidden_dim, T
    key = jax.random.PRNGKey(0)
    kx, kc, kt, kp = jax.random.split(key, 4)
    x = jax.random.normal(kx, (B, D), jnp.float32)
    cond = jax.random.normal(kc, (B, D), jnp.float32)
    t = jax.random.randint(kt, (B,), 0, T, dtype=jnp.int32)

    params = init_params(kp, D, H)
    emb_table = time_embedding_table(T, D)
    T_pad = ((T + 127) // 128) * 128
    table_padded = jnp.pad(emb_table, ((0, T_pad - T), (0, 0)))
    wslab, vslab = pack_params(params, D, H)

    out = diffusion_mlp_forward(x, t, cond, wslab, vslab, table_padded)
    out = jax.block_until_ready(out)

    ref = reference_forward(x, t, cond, params, emb_table)
    assert out.shape == (B, D)
    assert bool(jnp.allclose(out, ref, atol=2e-3, rtol=2e-3)), "mismatch vs JAX reference"
    print("KERNEL_OK")
</pallas_src>

<mosaic_0001>
module attributes {stable_mosaic.version = 11 : i64} {
  func.func @diffusion_mlp_kernel(%arg0: memref<8x16xf32, #tpu.memory_space<vmem>>, %arg1: memref<8x1xi32, #tpu.memory_space<vmem>>, %arg2: memref<8x16xf32, #tpu.memory_space<vmem>>, %arg3: memref<128x16xf32, #tpu.memory_space<vmem>>, %arg4: memref<320x32xf32, #tpu.memory_space<vmem>>, %arg5: memref<17x32xf32, #tpu.memory_space<vmem>>, %arg6: memref<8x16xf32, #tpu.memory_space<vmem>>) attributes {dimension_semantics = [], scalar_prefetch = 0 : i64, scratch_operands = 0 : i64, tpu.core_type = #tpu.core_type<tc>} {
    %c0 = arith.constant 0 : index
    %c0_0 = arith.constant 0 : index
    %0 = vector.load %arg0[%c0, %c0_0] : memref<8x16xf32, #tpu.memory_space<vmem>>, vector<8x16xf32>
    %c0_1 = arith.constant 0 : index
    %c0_2 = arith.constant 0 : index
    %1 = vector.load %arg2[%c0_1, %c0_2] : memref<8x16xf32, #tpu.memory_space<vmem>>, vector<8x16xf32>
    %2 = arith.mulf %1, %1 : vector<8x16xf32>
    %cst = arith.constant dense<0.000000e+00> : vector<8xf32>
    %3 = vector.multi_reduction <add>, %2, %cst [1] : vector<8x16xf32> to vector<8xf32>
    %4 = vector.shape_cast %3 : vector<8xf32> to vector<8x1xf32>
    %5 = math.sqrt %4 : vector<8x1xf32>
    %cst_3 = arith.constant 9.99999996E-13 : f32
    %6 = vector.broadcast %cst_3 : f32 to vector<8x1xf32>
    %7 = arith.maximumf %5, %6 : vector<8x1xf32>
    %8 = vector.broadcast %7 : vector<8x1xf32> to vector<8x16xf32>
    %9 = arith.divf %1, %8 : vector<8x16xf32>
    %c0_4 = arith.constant 0 : index
    %c0_5 = arith.constant 0 : index
    %10 = vector.load %arg1[%c0_4, %c0_5] : memref<8x1xi32, #tpu.memory_space<vmem>>, vector<8x1xi32>
    %11 = tpu.iota {dimensions = array<i32: 1>} : vector<8x128xi32>
    %12 = vector.broadcast %10 : vector<8x1xi32> to vector<8x128xi32>
    %13 = arith.cmpi eq, %11, %12 : vector<8x128xi32>
    %14 = arith.extui %13 : vector<8x128xi1> to vector<8x128xi32>
    %15 = arith.sitofp %14 : vector<8x128xi32> to vector<8x128xf32>
    %c0_6 = arith.constant 0 : index
    %c0_7 = arith.constant 0 : index
    %16 = vector.load %arg3[%c0_6, %c0_7] : memref<128x16xf32, #tpu.memory_space<vmem>>, vector<128x16xf32>
    %cst_8 = arith.constant dense<0.000000e+00> : vector<8x16xf32>
    %17 = tpu.matmul %15, %16, %cst_8 {dimension_numbers = #tpu.dot_dimension_numbers<[1], [0], [0], [1], [0, 0, 1, 1], [], []>} : vector<8x128xf32>, vector<128x16xf32>, vector<8x16xf32> -> vector<8x16xf32>
    %c0_9 = arith.constant 0 : index
    %c0_10 = arith.constant 0 : index
    %18 = vector.load %arg4[%c0_9, %c0_10] : memref<320x32xf32, #tpu.memory_space<vmem>>, vector<16x32xf32>
    %c0_11 = arith.constant 0 : index
    %c0_12 = arith.constant 0 : index
    %19 = vector.load %arg5[%c0_11, %c0_12] : memref<17x32xf32, #tpu.memory_space<vmem>>, vector<1x32xf32>
    %cst_13 = arith.constant dense<0.000000e+00> : vector<8x32xf32>
    %20 = tpu.matmul %17, %18, %cst_13 {dimension_numbers = #tpu.dot_dimension_numbers<[1], [0], [0], [1], [0, 0, 1, 1], [], []>} : vector<8x16xf32>, vector<16x32xf32>, vector<8x32xf32> -> vector<8x32xf32>
    %21 = vector.broadcast %19 : vector<1x32xf32> to vector<8x32xf32>
    %22 = arith.addf %20, %21 : vector<8x32xf32>
    %23 = arith.negf %22 : vector<8x32xf32>
    %24 = math.exp %23 : vector<8x32xf32>
    %cst_14 = arith.constant 1.000000e+00 : f32
    %25 = vector.broadcast %cst_14 : f32 to vector<8x32xf32>
    %26 = arith.addf %25, %24 : vector<8x32xf32>
    %27 = arith.divf %25, %26 : vector<8x32xf32>
    %28 = arith.mulf %22, %27 : vector<8x32xf32>
    %c16 = arith.constant 16 : index
    %c0_15 = arith.constant 0 : index
    %29 = vector.load %arg4[%c16, %c0_15] : memref<320x32xf32, #tpu.memory_space<vmem>>, vector<32x32xf32>
    %c1 = arith.constant 1 : index
    %c0_16 = arith.constant 0 : index
    %30 = vector.load %arg5[%c1, %c0_16] : memref<17x32xf32, #tpu.memory_space<vmem>>, vector<1x32xf32>
    %cst_17 = arith.constant dense<0.000000e+00> : vector<8x32xf32>
    %31 = tpu.matmul %28, %29, %cst_17 {dimension_numbers = #tpu.dot_dimension_numbers<[1], [0], [0], [1], [0, 0, 1, 1], [], []>} : vector<8x32xf32>, vector<32x32xf32>, vector<8x32xf32> -> vector<8x32xf32>
    %32 = vector.broadcast %30 : vector<1x32xf32> to vector<8x32xf32>
    %33 = arith.addf %31, %32 : vector<8x32xf32>
    %c2 = arith.constant 2 : index
    %c0_18 = arith.constant 0 : index
    %34 = vector.load %arg5[%c2, %c0_18] : memref<17x32xf32, #tpu.memory_space<vmem>>, vector<1x16xf32>
    %c3 = arith.constant 3 : index
    %c0_19 = arith.constant 0 : index
    %35 = vector.load %arg5[%c3, %c0_19] : memref<17x32xf32, #tpu.memory_space<vmem>>, vector<1x16xf32>
    %cst_20 = arith.constant dense<0.000000e+00> : vector<8xf32>
    %36 = vector.multi_reduction <add>, %9, %cst_20 [1] : vector<8x16xf32> to vector<8xf32>
    %37 = vector.shape_cast %36 : vector<8xf32> to vector<8x1xf32>
    %cst_21 = arith.constant 1.600000e+01 : f32
    %38 = vector.broadcast %cst_21 : f32 to vector<8x1xf32>
    %39 = arith.divf %37, %38 : vector<8x1xf32>
    %40 = vector.broadcast %39 : vector<8x1xf32> to vector<8x16xf32>
    %41 = arith.subf %9, %40 : vector<8x16xf32>
    %42 = arith.mulf %41, %41 : vector<8x16xf32>
    %cst_22 = arith.constant dense<0.000000e+00> : vector<8xf32>
    %43 = vector.multi_reduction <add>, %42, %cst_22 [1] : vector<8x16xf32> to vector<8xf32>
    %44 = vector.shape_cast %43 : vector<8xf32> to vector<8x1xf32>
    %cst_23 = arith.constant 1.600000e+01 : f32
    %45 = vector.broadcast %cst_23 : f32 to vector<8x1xf32>
    %46 = arith.divf %44, %45 : vector<8x1xf32>
    %47 = vector.broadcast %39 : vector<8x1xf32> to vector<8x16xf32>
    %48 = arith.subf %9, %47 : vector<8x16xf32>
    %cst_24 = arith.constant 9.99999974E-6 : f32
    %49 = vector.broadcast %cst_24 : f32 to vector<8x1xf32>
    %50 = arith.addf %46, %49 : vector<8x1xf32>
    %51 = math.rsqrt %50 : vector<8x1xf32>
    %52 = vector.broadcast %51 : vector<8x1xf32> to vector<8x16xf32>
    %53 = arith.mulf %48, %52 : vector<8x16xf32>
    %54 = vector.broadcast %34 : vector<1x16xf32> to vector<8x16xf32>
    %55 = arith.mulf %53, %54 : vector<8x16xf32>
    %56 = vector.broadcast %35 : vector<1x16xf32> to vector<8x16xf32>
    %57 = arith.addf %55, %56 : vector<8x16xf32>
    %58 = arith.negf %57 : vector<8x16xf32>
    %59 = math.exp %58 : vector<8x16xf32>
    %cst_25 = arith.constant 1.000000e+00 : f32
    %60 = vector.broadcast %cst_25 : f32 to vector<8x16xf32>
    %61 = arith.addf %60, %59 : vector<8x16xf32>
    %62 = arith.divf %60, %61 : vector<8x16xf32>
    %63 = arith.mulf %57, %62 : vector<8x16xf32>
    %c48 = arith.constant 48 : index
    %c0_26 = arith.constant 0 : index
    %64 = vector.load %arg4[%c48, %c0_26] : memref<320x32xf32, #tpu.memory_space<vmem>>, vector<16x32xf32>
    %c4 = arith.constant 4 : index
    %c0_27 = arith.constant 0 : index
    %65 = vector.load %arg5[%c4, %c0_27] : memref<17x32xf32, #tpu.memory_space<vmem>>, vector<1x32xf32>
    %cst_28 = arith.constant dense<0.000000e+00> : vector<8x32xf32>
    %66 = tpu.matmul %63, %64, %cst_28 {dimension_numbers = #tpu.dot_dimension_numbers<[1], [0], [0], [1], [0, 0, 1, 1], [], []>} : vector<8x16xf32>, vector<16x32xf32>, vector<8x32xf32> -> vector<8x32xf32>
    %67 = vector.broadcast %65 : vector<1x32xf32> to vector<8x32xf32>
    %68 = arith.addf %66, %67 : vector<8x32xf32>
    %69 = arith.negf %33 : vector<8x32xf32>
    %70 = math.exp %69 : vector<8x32xf32>
    %cst_29 = arith.constant 1.000000e+00 : f32
    %71 = vector.broadcast %cst_29 : f32 to vector<8x32xf32>
    %72 = arith.addf %71, %70 : vector<8x32xf32>
    %73 = arith.divf %71, %72 : vector<8x32xf32>
    %74 = arith.mulf %33, %73 : vector<8x32xf32>
    %75 = arith.negf %68 : vector<8x32xf32>
    %76 = math.exp %75 : vector<8x32xf32>
    %cst_30 = arith.constant 1.000000e+00 : f32
    %77 = vector.broadcast %cst_30 : f32 to vector<8x32xf32>
    %78 = arith.addf %77, %76 : vector<8x32xf32>
    %79 = arith.divf %77, %78 : vector<8x32xf32>
    %80 = arith.mulf %68, %79 : vector<8x32xf32>
    %81 = tpu.concatenate %74, %80 in 1 : vector<8x32xf32>, vector<8x32xf32> -> vector<8x64xf32>
    %c64 = arith.constant 64 : index
    %c0_31 = arith.constant 0 : index
    %82 = vector.load %arg4[%c64, %c0_31] : memref<320x32xf32, #tpu.memory_space<vmem>>, vector<64x32xf32>
    %cst_32 = arith.constant dense<0.000000e+00> : vector<8x32xf32>
    %83 = tpu.matmul %81, %82, %cst_32 {dimension_numbers = #tpu.dot_dimension_numbers<[1], [0], [0], [1], [0, 0, 1, 1], [], []>} : vector<8x64xf32>, vector<64x32xf32>, vector<8x32xf32> -> vector<8x32xf32>
    %c128 = arith.constant 128 : index
    %c0_33 = arith.constant 0 : index
    %84 = vector.load %arg4[%c128, %c0_33] : memref<320x32xf32, #tpu.memory_space<vmem>>, vector<64x32xf32>
    %cst_34 = arith.constant dense<0.000000e+00> : vector<8x32xf32>
    %85 = tpu.matmul %81, %84, %cst_34 {dimension_numbers = #tpu.dot_dimension_numbers<[1], [0], [0], [1], [0, 0, 1, 1], [], []>} : vector<8x64xf32>, vector<64x32xf32>, vector<8x32xf32> -> vector<8x32xf32>
    %c5 = arith.constant 5 : index
    %c0_35 = arith.constant 0 : index
    %86 = vector.load %arg5[%c5, %c0_35] : memref<17x32xf32, #tpu.memory_space<vmem>>, vector<1x16xf32>
    %c6 = arith.constant 6 : index
    %c0_36 = arith.constant 0 : index
    %87 = vector.load %arg5[%c6, %c0_36] : memref<17x32xf32, #tpu.memory_space<vmem>>, vector<1x16xf32>
    %cst_37 = arith.constant dense<0.000000e+00> : vector<8xf32>
    %88 = vector.multi_reduction <add>, %0, %cst_37 [1] : vector<8x16xf32> to vector<8xf32>
    %89 = vector.shape_cast %88 : vector<8xf32> to vector<8x1xf32>
    %cst_38 = arith.constant 1.600000e+01 : f32
    %90 = vector.broadcast %cst_38 : f32 to vector<8x1xf32>
    %91 = arith.divf %89, %90 : vector<8x1xf32>
    %92 = vector.broadcast %91 : vector<8x1xf32> to vector<8x16xf32>
    %93 = arith.subf %0, %92 : vector<8x16xf32>
    %94 = arith.mulf %93, %93 : vector<8x16xf32>
    %cst_39 = arith.constant dense<0.000000e+00> : vector<8xf32>
    %95 = vector.multi_reduction <add>, %94, %cst_39 [1] : vector<8x16xf32> to vector<8xf32>
    %96 = vector.shape_cast %95 : vector<8xf32> to vector<8x1xf32>
    %cst_40 = arith.constant 1.600000e+01 : f32
    %97 = vector.broadcast %cst_40 : f32 to vector<8x1xf32>
    %98 = arith.divf %96, %97 : vector<8x1xf32>
    %99 = vector.broadcast %91 : vector<8x1xf32> to vector<8x16xf32>
    %100 = arith.subf %0, %99 : vector<8x16xf32>
    %cst_41 = arith.constant 9.99999974E-6 : f32
    %101 = vector.broadcast %cst_41 : f32 to vector<8x1xf32>
    %102 = arith.addf %98, %101 : vector<8x1xf32>
    %103 = math.rsqrt %102 : vector<8x1xf32>
    %104 = vector.broadcast %103 : vector<8x1xf32> to vector<8x16xf32>
    %105 = arith.mulf %100, %104 : vector<8x16xf32>
    %106 = vector.broadcast %86 : vector<1x16xf32> to vector<8x16xf32>
    %107 = arith.mulf %105, %106 : vector<8x16xf32>
    %108 = vector.broadcast %87 : vector<1x16xf32> to vector<8x16xf32>
    %109 = arith.addf %107, %108 : vector<8x16xf32>
    %110 = arith.negf %109 : vector<8x16xf32>
    %111 = math.exp %110 : vector<8x16xf32>
    %cst_42 = arith.constant 1.000000e+00 : f32
    %112 = vector.broadcast %cst_42 : f32 to vector<8x16xf32>
    %113 = arith.addf %112, %111 : vector<8x16xf32>
    %114 = arith.divf %112, %113 : vector<8x16xf32>
    %115 = arith.mulf %109, %114 : vector<8x16xf32>
    %c192 = arith.constant 192 : index
    %c0_43 = arith.constant 0 : index
    %116 = vector.load %arg4[%c192, %c0_43] : memref<320x32xf32, #tpu.memory_space<vmem>>, vector<16x32xf32>
    %cst_44 = arith.constant dense<0.000000e+00> : vector<8x32xf32>
    %117 = tpu.matmul %115, %116, %cst_44 {dimension_numbers = #tpu.dot_dimension_numbers<[1], [0], [0], [1], [0, 0, 1, 1], [], []>} : vector<8x16xf32>, vector<16x32xf32>, vector<8x32xf32> -> vector<8x32xf32>
    %c7 = arith.constant 7 : index
    %c0_45 = arith.constant 0 : index
    %118 = vector.load %arg5[%c7, %c0_45] : memref<17x32xf32, #tpu.memory_space<vmem>>, vector<1x32xf32>
    %119 = vector.broadcast %118 : vector<1x32xf32> to vector<8x32xf32>
    %120 = arith.addf %117, %119 : vector<8x32xf32>
    %121 = arith.addf %120, %83 : vector<8x32xf32>
    %c8 = arith.constant 8 : index
    %c0_46 = arith.constant 0 : index
    %122 = vector.load %arg5[%c8, %c0_46] : memref<17x32xf32, #tpu.memory_space<vmem>>, vector<1x32xf32>
    %c9 = arith.constant 9 : index
    %c0_47 = arith.constant 0 : index
    %123 = vector.load %arg5[%c9, %c0_47] : memref<17x32xf32, #tpu.memory_space<vmem>>, vector<1x32xf32>
    %cst_48 = arith.constant dense<0.000000e+00> : vector<8xf32>
    %124 = vector.multi_reduction <add>, %121, %cst_48 [1] : vector<8x32xf32> to vector<8xf32>
    %125 = vector.shape_cast %124 : vector<8xf32> to vector<8x1xf32>
    %cst_49 = arith.constant 3.200000e+01 : f32
    %126 = vector.broadcast %cst_49 : f32 to vector<8x1xf32>
    %127 = arith.divf %125, %126 : vector<8x1xf32>
    %128 = vector.broadcast %127 : vector<8x1xf32> to vector<8x32xf32>
    %129 = arith.subf %121, %128 : vector<8x32xf32>
    %130 = arith.mulf %129, %129 : vector<8x32xf32>
    %cst_50 = arith.constant dense<0.000000e+00> : vector<8xf32>
    %131 = vector.multi_reduction <add>, %130, %cst_50 [1] : vector<8x32xf32> to vector<8xf32>
    %132 = vector.shape_cast %131 : vector<8xf32> to vector<8x1xf32>
    %cst_51 = arith.constant 3.200000e+01 : f32
    %133 = vector.broadcast %cst_51 : f32 to vector<8x1xf32>
    %134 = arith.divf %132, %133 : vector<8x1xf32>
    %135 = vector.broadcast %127 : vector<8x1xf32> to vector<8x32xf32>
    %136 = arith.subf %121, %135 : vector<8x32xf32>
    %cst_52 = arith.constant 9.99999974E-6 : f32
    %137 = vector.broadcast %cst_52 : f32 to vector<8x1xf32>
    %138 = arith.addf %134, %137 : vector<8x1xf32>
    %139 = math.rsqrt %138 : vector<8x1xf32>
    %140 = vector.broadcast %139 : vector<8x1xf32> to vector<8x32xf32>
    %141 = arith.mulf %136, %140 : vector<8x32xf32>
    %142 = vector.broadcast %122 : vector<1x32xf32> to vector<8x32xf32>
    %143 = arith.mulf %141, %142 : vector<8x32xf32>
    %144 = vector.broadcast %123 : vector<1x32xf32> to vector<8x32xf32>
    %145 = arith.addf %143, %144 : vector<8x32xf32>
    %146 = arith.negf %145 : vector<8x32xf32>
    %147 = math.exp %146 : vector<8x32xf32>
    %cst_53 = arith.constant 1.000000e+00 : f32
    %148 = vector.broadcast %cst_53 : f32 to vector<8x32xf32>
    %149 = arith.addf %148, %147 : vector<8x32xf32>
    %150 = arith.divf %148, %149 : vector<8x32xf32>
    %151 = arith.mulf %145, %150 : vector<8x32xf32>
    %152 = tpu.concatenate %151, %0 in 1 : vector<8x32xf32>, vector<8x16xf32> -> vector<8x48xf32>
    %c208 = arith.constant 208 : index
    %c0_54 = arith.constant 0 : index
    %153 = vector.load %arg4[%c208, %c0_54] : memref<320x32xf32, #tpu.memory_space<vmem>>, vector<48x16xf32>
    %c10 = arith.constant 10 : index
    %c0_55 = arith.constant 0 : index
    %154 = vector.load %arg5[%c10, %c0_55] : memref<17x32xf32, #tpu.memory_space<vmem>>, vector<1x16xf32>
    %cst_56 = arith.constant dense<0.000000e+00> : vector<8x16xf32>
    %155 = tpu.matmul %152, %153, %cst_56 {dimension_numbers = #tpu.dot_dimension_numbers<[1], [0], [0], [1], [0, 0, 1, 1], [], []>} : vector<8x48xf32>, vector<48x16xf32>, vector<8x16xf32> -> vector<8x16xf32>
    %156 = vector.broadcast %154 : vector<1x16xf32> to vector<8x16xf32>
    %157 = arith.addf %155, %156 : vector<8x16xf32>
    %c11 = arith.constant 11 : index
    %c0_57 = arith.constant 0 : index
    %158 = vector.load %arg5[%c11, %c0_57] : memref<17x32xf32, #tpu.memory_space<vmem>>, vector<1x16xf32>
    %c12 = arith.constant 12 : index
    %c0_58 = arith.constant 0 : index
    %159 = vector.load %arg5[%c12, %c0_58] : memref<17x32xf32, #tpu.memory_space<vmem>>, vector<1x16xf32>
    %cst_59 = arith.constant dense<0.000000e+00> : vector<8xf32>
    %160 = vector.multi_reduction <add>, %157, %cst_59 [1] : vector<8x16xf32> to vector<8xf32>
    %161 = vector.shape_cast %160 : vector<8xf32> to vector<8x1xf32>
    %cst_60 = arith.constant 1.600000e+01 : f32
    %162 = vector.broadcast %cst_60 : f32 to vector<8x1xf32>
    %163 = arith.divf %161, %162 : vector<8x1xf32>
    %164 = vector.broadcast %163 : vector<8x1xf32> to vector<8x16xf32>
    %165 = arith.subf %157, %164 : vector<8x16xf32>
    %166 = arith.mulf %165, %165 : vector<8x16xf32>
    %cst_61 = arith.constant dense<0.000000e+00> : vector<8xf32>
    %167 = vector.multi_reduction <add>, %166, %cst_61 [1] : vector<8x16xf32> to vector<8xf32>
    %168 = vector.shape_cast %167 : vector<8xf32> to vector<8x1xf32>
    %cst_62 = arith.constant 1.600000e+01 : f32
    %169 = vector.broadcast %cst_62 : f32 to vector<8x1xf32>
    %170 = arith.divf %168, %169 : vector<8x1xf32>
    %171 = vector.broadcast %163 : vector<8x1xf32> to vector<8x16xf32>
    %172 = arith.subf %157, %171 : vector<8x16xf32>
    %cst_63 = arith.constant 9.99999974E-6 : f32
    %173 = vector.broadcast %cst_63 : f32 to vector<8x1xf32>
    %174 = arith.addf %170, %173 : vector<8x1xf32>
    %175 = math.rsqrt %174 : vector<8x1xf32>
    %176 = vector.broadcast %175 : vector<8x1xf32> to vector<8x16xf32>
    %177 = arith.mulf %172, %176 : vector<8x16xf32>
    %178 = vector.broadcast %158 : vector<1x16xf32> to vector<8x16xf32>
    %179 = arith.mulf %177, %178 : vector<8x16xf32>
    %180 = vector.broadcast %159 : vector<1x16xf32> to vector<8x16xf32>
    %181 = arith.addf %179, %180 : vector<8x16xf32>
    %182 = arith.negf %181 : vector<8x16xf32>
    %183 = math.exp %182 : vector<8x16xf32>
    %cst_64 = arith.constant 1.000000e+00 : f32
    %184 = vector.broadcast %cst_64 : f32 to vector<8x16xf32>
    %185 = arith.addf %184, %183 : vector<8x16xf32>
    %186 = arith.divf %184, %185 : vector<8x16xf32>
    %187 = arith.mulf %181, %186 : vector<8x16xf32>
    %c256 = arith.constant 256 : index
    %c0_65 = arith.constant 0 : index
    %188 = vector.load %arg4[%c256, %c0_65] : memref<320x32xf32, #tpu.memory_space<vmem>>, vector<16x32xf32>
    %cst_66 = arith.constant dense<0.000000e+00> : vector<8x32xf32>
    %189 = tpu.matmul %187, %188, %cst_66 {dimension_numbers = #tpu.dot_dimension_numbers<[1], [0], [0], [1], [0, 0, 1, 1], [], []>} : vector<8x16xf32>, vector<16x32xf32>, vector<8x32xf32> -> vector<8x32xf32>
    %c13 = arith.constant 13 : index
    %c0_67 = arith.constant 0 : index
    %190 = vector.load %arg5[%c13, %c0_67] : memref<17x32xf32, #tpu.memory_space<vmem>>, vector<1x32xf32>
    %191 = vector.broadcast %190 : vector<1x32xf32> to vector<8x32xf32>
    %192 = arith.addf %189, %191 : vector<8x32xf32>
    %193 = arith.addf %192, %85 : vector<8x32xf32>
    %c14 = arith.constant 14 : index
    %c0_68 = arith.constant 0 : index
    %194 = vector.load %arg5[%c14, %c0_68] : memref<17x32xf32, #tpu.memory_space<vmem>>, vector<1x32xf32>
    %c15 = arith.constant 15 : index
    %c0_69 = arith.constant 0 : index
    %195 = vector.load %arg5[%c15, %c0_69] : memref<17x32xf32, #tpu.memory_space<vmem>>, vector<1x32xf32>
    %cst_70 = arith.constant dense<0.000000e+00> : vector<8xf32>
    %196 = vector.multi_reduction <add>, %193, %cst_70 [1] : vector<8x32xf32> to vector<8xf32>
    %197 = vector.shape_cast %196 : vector<8xf32> to vector<8x1xf32>
    %cst_71 = arith.constant 3.200000e+01 : f32
    %198 = vector.broadcast %cst_71 : f32 to vector<8x1xf32>
    %199 = arith.divf %197, %198 : vector<8x1xf32>
    %200 = vector.broadcast %199 : vector<8x1xf32> to vector<8x32xf32>
    %201 = arith.subf %193, %200 : vector<8x32xf32>
    %202 = arith.mulf %201, %201 : vector<8x32xf32>
    %cst_72 = arith.constant dense<0.000000e+00> : vector<8xf32>
    %203 = vector.multi_reduction <add>, %202, %cst_72 [1] : vector<8x32xf32> to vector<8xf32>
    %204 = vector.shape_cast %203 : vector<8xf32> to vector<8x1xf32>
    %cst_73 = arith.constant 3.200000e+01 : f32
    %205 = vector.broadcast %cst_73 : f32 to vector<8x1xf32>
    %206 = arith.divf %204, %205 : vector<8x1xf32>
    %207 = vector.broadcast %199 : vector<8x1xf32> to vector<8x32xf32>
    %208 = arith.subf %193, %207 : vector<8x32xf32>
    %cst_74 = arith.constant 9.99999974E-6 : f32
    %209 = vector.broadcast %cst_74 : f32 to vector<8x1xf32>
    %210 = arith.addf %206, %209 : vector<8x1xf32>
    %211 = math.rsqrt %210 : vector<8x1xf32>
    %212 = vector.broadcast %211 : vector<8x1xf32> to vector<8x32xf32>
    %213 = arith.mulf %208, %212 : vector<8x32xf32>
    %214 = vector.broadcast %194 : vector<1x32xf32> to vector<8x32xf32>
    %215 = arith.mulf %213, %214 : vector<8x32xf32>
    %216 = vector.broadcast %195 : vector<1x32xf32> to vector<8x32xf32>
    %217 = arith.addf %215, %216 : vector<8x32xf32>
    %218 = arith.negf %217 : vector<8x32xf32>
    %219 = math.exp %218 : vector<8x32xf32>
    %cst_75 = arith.constant 1.000000e+00 : f32
    %220 = vector.broadcast %cst_75 : f32 to vector<8x32xf32>
    %221 = arith.addf %220, %219 : vector<8x32xf32>
    %222 = arith.divf %220, %221 : vector<8x32xf32>
    %223 = arith.mulf %217, %222 : vector<8x32xf32>
    %224 = tpu.concatenate %223, %157 in 1 : vector<8x32xf32>, vector<8x16xf32> -> vector<8x48xf32>
    %c272 = arith.constant 272 : index
    %c0_76 = arith.constant 0 : index
    %225 = vector.load %arg4[%c272, %c0_76] : memref<320x32xf32, #tpu.memory_space<vmem>>, vector<48x16xf32>
    %c16_77 = arith.constant 16 : index
    %c0_78 = arith.constant 0 : index
    %226 = vector.load %arg5[%c16_77, %c0_78] : memref<17x32xf32, #tpu.memory_space<vmem>>, vector<1x16xf32>
    %cst_79 = arith.constant dense<0.000000e+00> : vector<8x16xf32>
    %227 = tpu.matmul %224, %225, %cst_79 {dimension_numbers = #tpu.dot_dimension_numbers<[1], [0], [0], [1], [0, 0, 1, 1], [], []>} : vector<8x48xf32>, vector<48x16xf32>, vector<8x16xf32> -> vector<8x16xf32>
    %228 = vector.broadcast %226 : vector<1x16xf32> to vector<8x16xf32>
    %229 = arith.addf %227, %228 : vector<8x16xf32>
    %c0_80 = arith.constant 0 : index
    %c0_81 = arith.constant 0 : index
    %230 = vector.load %arg6[%c0_80, %c0_81] : memref<8x16xf32, #tpu.memory_space<vmem>>, vector<8x16xf32>
    tpu.vector_store %arg6[%c0_80, %c0_81], %229 {strides = array<i32>} : memref<8x16xf32, #tpu.memory_space<vmem>>, vector<8x16xf32>,
    return
  }
}

</mosaic_0001>

<llo_original>
// kernel: tpu_custom_call.1
$region0: #{tpu_custom_call.1}
  #allocation0 [shape = 'u32[]', space=smem, size = 0x4, offset = 0x4, fixed_abs, tag = 'smem constant byte address 0x4 - core index']
  #allocation1 [shape = 'u32[144,128]{1,0:T(1,128)}', space=vmem, size = 0x12000, scoped, tag = 'internal scratch']
  %s0 = inlined_call_operand.vmem [shape: f32[8,16], index: 0, kind: input, shape index: {}]
  %s1 = inlined_call_operand.vmem [shape: s32[8,1], index: 1, kind: input, shape index: {}]
  %s2 = inlined_call_operand.vmem [shape: f32[8,16], index: 2, kind: input, shape index: {}]
  %s3 = inlined_call_operand.vmem [shape: f32[128,16], index: 3, kind: input, shape index: {}]
  %s4 = inlined_call_operand.vmem [shape: f32[320,32], index: 4, kind: input, shape index: {}]
  %s5 = inlined_call_operand.vmem [shape: f32[17,32], index: 5, kind: input, shape index: {}]
  %s6 = inlined_call_operand.hbm [shape: f32[8,16], index: 6, kind: output, shape index: {}]
  %s7 = sld [smem:[#allocation0]]
  $region34: #{tpu_custom_call.1} parent=0
    _
  %s9 = ssub.s32 1, %s7
  %s10 = scalar_select 0, %s9, %s7
  $region1: #{tpu_custom_call.1} parent=0
    #allocation2 [shape = 'u8[4096]{0}', space=vmem, size = 0x1000, scoped, tag = 'output window, operand 0, single buffered']
    #allocation3 [shape = 's32[1]{0}', space=sflag, size = 0x4, scoped, tag = 'scoped memory for tpu_custom_call.1']
    %11 = vsyncpa [#allocation3], 0
    // Predicated region
    $region2: #{tpu_custom_call.1} parent=1 // pred_check
      _
    $region3: #{tpu_custom_call.1} parent=1 // pred_check_branch
      %13 = sbr.rel (0) target = $region5
    $region4: #{tpu_custom_call.1} parent=1 // pred_region
      _
    $region5: #{tpu_custom_call.1} parent=1 // pred_fallthru
      _
    // Predicated region
    $region6: #{tpu_custom_call.1} parent=1 // pred_check
      _
    $region7: #{tpu_custom_call.1} parent=1 // pred_check_branch
      %15 = sbr.rel (0) target = $region9
    $region8: #{tpu_custom_call.1} parent=1 // pred_region
      _
    $region9: #{tpu_custom_call.1} parent=1 // pred_fallthru
      _
    // Predicated region
    $region10: #{tpu_custom_call.1} parent=1 // pred_check
      _
    $region11: #{tpu_custom_call.1} parent=1 // pred_check_branch
      %17 = sbr.rel (0) target = $region13
    $region12: #{tpu_custom_call.1} parent=1 // pred_region
      _
    $region13: #{tpu_custom_call.1} parent=1 // pred_fallthru
      _
    // Predicated region
    $region14: #{tpu_custom_call.1} parent=1 // pred_check
      _
    $region15: #{tpu_custom_call.1} parent=1 // pred_check_branch
      %19 = sbr.rel (0) target = $region17
    $region16: #{tpu_custom_call.1} parent=1 // pred_region
      _
    $region17: #{tpu_custom_call.1} parent=1 // pred_fallthru
      _
    // Predicated region
    $region18: #{tpu_custom_call.1} parent=1 // pred_check
      _
    $region19: #{tpu_custom_call.1} parent=1 // pred_check_branch
      %21 = sbr.rel (0) target = $region21
    $region20: #{tpu_custom_call.1} parent=1 // pred_region
      _
    $region21: #{tpu_custom_call.1} parent=1 // pred_fallthru
      _
    // Predicated region
    $region22: #{tpu_custom_call.1} parent=1 // pred_check
      _
    $region23: #{tpu_custom_call.1} parent=1 // pred_check_branch
      %23 = sbr.rel (0) target = $region25
    $region24: #{tpu_custom_call.1} parent=1 // pred_region
      _
    $region25: #{tpu_custom_call.1} parent=1 // pred_fallthru
      _
    %v24 = vld [vmem:[%s0] sm:$0xff]
    %v25 = vld [vmem:[%s2] sm:$0xff]
    %v26 = vmul.f32 %v25, %v25
    %vm27 = vcmask 130048
    %v28 = vsel %vm27, %v26, 0.0
    %29 = vadd.xlane.f32.xlu0 %v28
    %v30 = vpop.xlane.xlu0 %29
    %v31 = vrsqrt.pop %v30
    %v32 = vmul.f32 %v30, %v31
    %vm33 = vcmp.eq.f32.partialorder %v30, inf
    %v34 = vsel %vm33, %v30, %v32
    %vm35 = vcmp.eq.f32.partialorder %v30, 0.0
    %v36 = vand.u32 %v30, 2147483648
    %v37 = vsel %vm35, %v36, %v34
    %v38 = vmax.f32 %v37, 1e-12
    %v39 = vrcp.pop %v38
    %v40 = vmul.f32 %v25, %v39
    %v41 = vld [vmem:[%s1] sm:$0xff]
    %v42 = vlaneseq
    %v43 = vand.u32 %v42, 127
    %44 = vset.pattern.permute.xlu0 0
    %45 = vperm.xlu0 %44, %v41
    %v46 = vpop.permute.xlu0 %45
    %vm47 = vcmp.eq.s32.totalorder %v43, %v46
    %v48 = vsel %vm47, 1, 0
    %v49 = vcvt.s32.f32 %v48
    %v50 = vld [vmem:[%s3] sm:$0xff]
    %v51 = vld [vmem:[%s3 + $0x8] sm:$0xff]
    %v52 = vld [vmem:[%s3 + $0x10] sm:$0xff]
    %v53 = vld [vmem:[%s3 + $0x18] sm:$0xff]
    %v54 = vld [vmem:[%s3 + $0x20] sm:$0xff]
    %v55 = vld [vmem:[%s3 + $0x28] sm:$0xff]
    %v56 = vld [vmem:[%s3 + $0x30] sm:$0xff]
    %v57 = vld [vmem:[%s3 + $0x38] sm:$0xff]
    %v58 = vld [vmem:[%s3 + $0x40] sm:$0xff]
    %v59 = vld [vmem:[%s3 + $0x48] sm:$0xff]
    %v60 = vld [vmem:[%s3 + $0x50] sm:$0xff]
    %v61 = vld [vmem:[%s3 + $0x58] sm:$0xff]
    %v62 = vld [vmem:[%s3 + $0x60] sm:$0xff]
    %v63 = vld [vmem:[%s3 + $0x68] sm:$0xff]
    %v64 = vld [vmem:[%s3 + $0x70] sm:$0xff]
    %v65 = vld [vmem:[%s3 + $0x78] sm:$0xff]
    %66 = vmatprep.subr.mxu0 0.0
    %67 = vmatpush1.msra.mxu0 %v65
    %68 = vmatprep.subr.mxu0 0.0
    %69 = vmatpush1.msra.mxu0 %v64
    %70 = vmatprep.subr.mxu0 0.0
    %71 = vmatpush1.msra.mxu0 %v63
    %72 = vmatprep.subr.mxu0 0.0
    %73 = vmatpush1.msra.mxu0 %v62
    %74 = vmatprep.subr.mxu0 0.0
    %75 = vmatpush1.msra.mxu0 %v61
    %76 = vmatprep.subr.mxu0 0.0
    %77 = vmatpush1.msra.mxu0 %v60
    %78 = vmatprep.subr.mxu0 0.0
    %79 = vmatpush1.msra.mxu0 %v59
    %80 = vmatprep.subr.mxu0 0.0
    %81 = vmatpush1.msra.mxu0 %v58
    %82 = vmatprep.subr.mxu0 0.0
    %83 = vmatpush1.msra.mxu0 %v57
    %84 = vmatprep.subr.mxu0 0.0
    %85 = vmatpush1.msra.mxu0 %v56
    %86 = vmatprep.subr.mxu0 0.0
    %87 = vmatpush1.msra.mxu0 %v55
    %88 = vmatprep.subr.mxu0 0.0
    %89 = vmatpush1.msra.mxu0 %v54
    %90 = vmatprep.subr.mxu0 0.0
    %91 = vmatpush1.msra.mxu0 %v53
    %92 = vmatprep.subr.mxu0 0.0
    %93 = vmatpush1.msra.mxu0 %v52
    %94 = vmatprep.subr.mxu0 0.0
    %95 = vmatpush1.msra.mxu0 %v51
    %96 = vmatprep.subr.mxu0 0.0
    %97 = vmatpush1.msra.mxu0 %v50
    %98 = vmatprep.subr.mxu0 0.0
    %99 = vmatpush2.msra.mxu0 0.0
    %100 = vmatprep.subr.mxu0 0.0
    %101 = vmatpush2.msra.mxu0 0.0
    %102 = vmatprep.subr.mxu0 0.0
    %103 = vmatpush2.msra.mxu0 0.0
    %104 = vmatprep.subr.mxu0 0.0
    %105 = vmatpush2.msra.mxu0 0.0
    %106 = vmatprep.subr.mxu0 0.0
    %107 = vmatpush2.msra.mxu0 0.0
    %108 = vmatprep.subr.mxu0 0.0
    %109 = vmatpush2.msra.mxu0 0.0
    %110 = vmatprep.subr.mxu0 0.0
    %111 = vmatpush2.msra.mxu0 0.0
    %112 = vmatprep.subr.mxu0 0.0
    %113 = vmatpush2.msra.mxu0 0.0
    %114 = vmatprep.subr.mxu0 0.0
    %115 = vmatpush2.msra.mxu0 0.0
    %116 = vmatprep.subr.mxu0 0.0
    %117 = vmatpush2.msra.mxu0 0.0
    %118 = vmatprep.subr.mxu0 0.0
    %119 = vmatpush2.msra.mxu0 0.0
    %120 = vmatprep.subr.mxu0 0.0
    %121 = vmatpush2.msra.mxu0 0.0
    %122 = vmatprep.subr.mxu0 0.0
    %123 = vmatpush2.msra.mxu0 0.0
    %124 = vmatprep.subr.mxu0 0.0
    %125 = vmatpush2.msra.mxu0 0.0
    %126 = vmatprep.subr.mxu0 0.0
    %127 = vmatpush2.msra.mxu0 0.0
    %128 = vmatprep.subr.mxu0 0.0
    %129 = vmatpush2.msra.mxu0 0.0
    %130 = vmatprep.mubr.f32.mxu0 0.0
    %131 = vmatmul.mubr.f32.gmra.mxu0 %v49
    %v132 = vpop.f32.mrf.mxu0
    %v133 = vadd.f32 0.0, %v132
    %v134 = vpop.f32.mrf.mxu0
    %135 = vdwg.mxu0
    %v136 = vld [vmem:[%s4] sm:$0xff]
    %v137 = vld [vmem:[%s4 + $0x8] sm:$0xff]
    %v138 = vld [vmem:[%s5] sm:$0x1]
    %v139 = vlaneseq
    %v140 = vshrl.u32 %v139, 7
    %v141 = vsub.s32 0, %v140
    %v142 = vrot.slane %v138, %v141
    %v144 = vsel %vm27, %v133, 0
    %146 = vmatprep.subr.mxu0 0.0
    %147 = vmatpush1.msra.mxu0 0.0
    %148 = vmatprep.subr.mxu0 0.0
    %149 = vmatpush1.msra.mxu0 0.0
    %150 = vmatprep.subr.mxu0 0.0
    %151 = vmatpush1.msra.mxu0 0.0
    %152 = vmatprep.subr.mxu0 0.0
    %153 = vmatpush1.msra.mxu0 0.0
    %154 = vmatprep.subr.mxu0 0.0
    %155 = vmatpush1.msra.mxu0 0.0
    %156 = vmatprep.subr.mxu0 0.0
    %157 = vmatpush1.msra.mxu0 0.0
    %158 = vmatprep.subr.mxu0 0.0
    %159 = vmatpush1.msra.mxu0 0.0
    %160 = vmatprep.subr.mxu0 0.0
    %161 = vmatpush1.msra.mxu0 0.0
    %162 = vmatprep.subr.mxu0 0.0
    %163 = vmatpush1.msra.mxu0 0.0
    %164 = vmatprep.subr.mxu0 0.0
    %165 = vmatpush1.msra.mxu0 0.0
    %166 = vmatprep.subr.mxu0 0.0
    %167 = vmatpush1.msra.mxu0 0.0
    %168 = vmatprep.subr.mxu0 0.0
    %169 = vmatpush1.msra.mxu0 0.0
    %170 = vmatprep.subr.mxu0 0.0
    %171 = vmatpush1.msra.mxu0 0.0
    %172 = vmatprep.subr.mxu0 0.0
    %173 = vmatpush1.msra.mxu0 0.0
    %174 = vmatprep.subr.mxu0 0.0
    %175 = vmatpush1.msra.mxu0 %v137
    %176 = vmatprep.subr.mxu0 0.0
    %177 = vmatpush1.msra.mxu0 %v136
    %178 = vmatprep.subr.mxu0 0.0
    %179 = vmatpush2.msra.mxu0 0.0
    %180 = vmatprep.subr.mxu0 0.0
    %181 = vmatpush2.msra.mxu0 0.0
    %182 = vmatprep.subr.mxu0 0.0
    %183 = vmatpush2.msra.mxu0 0.0
    %184 = vmatprep.subr.mxu0 0.0
    %185 = vmatpush2.msra.mxu0 0.0
    %186 = vmatprep.subr.mxu0 0.0
    %187 = vmatpush2.msra.mxu0 0.0
    %188 = vmatprep.subr.mxu0 0.0
    %189 = vmatpush2.msra.mxu0 0.0
    %190 = vmatprep.subr.mxu0 0.0
    %191 = vmatpush2.msra.mxu0 0.0
    %192 = vmatprep.subr.mxu0 0.0
    %193 = vmatpush2.msra.mxu0 0.0
    %194 = vmatprep.subr.mxu0 0.0
    %195 = vmatpush2.msra.mxu0 0.0
    %196 = vmatprep.subr.mxu0 0.0
    %197 = vmatpush2.msra.mxu0 0.0
    %198 = vmatprep.subr.mxu0 0.0
    %199 = vmatpush2.msra.mxu0 0.0
    %200 = vmatprep.subr.mxu0 0.0
    %201 = vmatpush2.msra.mxu0 0.0
    %202 = vmatprep.subr.mxu0 0.0
    %203 = vmatpush2.msra.mxu0 0.0
    %204 = vmatprep.subr.mxu0 0.0
    %205 = vmatpush2.msra.mxu0 0.0
    %206 = vmatprep.subr.mxu0 0.0
    %207 = vmatpush2.msra.mxu0 0.0
    %208 = vmatprep.subr.mxu0 0.0
    %209 = vmatpush2.msra.mxu0 0.0
    %210 = vmatprep.mubr.f32.mxu0 0.0
    %211 = vmatmul.mubr.f32.gmra.mxu0 %v144
    %v212 = vpop.f32.mrf.mxu0
    %v213 = vadd.f32 %v142, %v212
    %v214 = vpop.f32.mrf.mxu0
    %215 = vdwg.mxu0
    %v216 = vxor.u32 %v213, 2147483648
    %v217 = vmul.f32 %v216, 1.442695
    %v218 = vpow.pop %v217
    %v219 = vadd.f32 %v218, 1.0
    %v220 = vrcp.pop %v219
    %v221 = vmul.f32 1.0, %v220
    %v222 = vmul.f32 %v213, %v221
    %v223 = vld [vmem:[%s4 + $0x10] sm:$0xff]
    %v224 = vld [vmem:[%s4 + $0x18] sm:$0xff]
    %v225 = vld [vmem:[%s4 + $0x20] sm:$0xff]
    %v226 = vld [vmem:[%s4 + $0x28] sm:$0xff]
    %v227 = vld [vmem:[%s5 + $0x1] sm:$0x1]
    %v228 = vlaneseq
    %v229 = vshrl.u32 %v228, 7
    %v230 = vsub.s32 0, %v229
    %v231 = vrot.slane %v227, %v230
    %vm232 = vcmask 261120
    %v234 = vsel %vm232, %v222, 0
    %236 = vmatprep.subr.mxu0 0.0
    %237 = vmatpush1.msra.mxu0 0.0
    %238 = vmatprep.subr.mxu0 0.0
    %239 = vmatpush1.msra.mxu0 0.0
    %240 = vmatprep.subr.mxu0 0.0
    %241 = vmatpush1.msra.mxu0 0.0
    %242 = vmatprep.subr.mxu0 0.0
    %243 = vmatpush1.msra.mxu0 0.0
    %244 = vmatprep.subr.mxu0 0.0
    %245 = vmatpush1.msra.mxu0 0.0
    %246 = vmatprep.subr.mxu0 0.0
    %247 = vmatpush1.msra.mxu0 0.0
    %248 = vmatprep.subr.mxu0 0.0
    %249 = vmatpush1.msra.mxu0 0.0
    %250 = vmatprep.subr.mxu0 0.0
    %251 = vmatpush1.msra.mxu0 0.0
    %252 = vmatprep.subr.mxu0 0.0
    %253 = vmatpush1.msra.mxu0 0.0
    %254 = vmatprep.subr.mxu0 0.0
    %255 = vmatpush1.msra.mxu0 0.0
    %256 = vmatprep.subr.mxu0 0.0
    %257 = vmatpush1.msra.mxu0 0.0
    %258 = vmatprep.subr.mxu0 0.0
    %259 = vmatpush1.msra.mxu0 0.0
    %260 = vmatprep.subr.mxu0 0.0
    %261 = vmatpush1.msra.mxu0 %v226
    %262 = vmatprep.subr.mxu0 0.0
    %263 = vmatpush1.msra.mxu0 %v225
    %264 = vmatprep.subr.mxu0 0.0
    %265 = vmatpush1.msra.mxu0 %v224
    %266 = vmatprep.subr.mxu0 0.0
    %267 = vmatpush1.msra.mxu0 %v223
    %268 = vmatprep.subr.mxu0 0.0
    %269 = vmatpush2.msra.mxu0 0.0
    %270 = vmatprep.subr.mxu0 0.0
    %271 = vmatpush2.msra.mxu0 0.0
    %272 = vmatprep.subr.mxu0 0.0
    %273 = vmatpush2.msra.mxu0 0.0
    %274 = vmatprep.subr.mxu0 0.0
    %275 = vmatpush2.msra.mxu0 0.0
    %276 = vmatprep.subr.mxu0 0.0
    %277 = vmatpush2.msra.mxu0 0.0
    %278 = vmatprep.subr.mxu0 0.0
    %279 = vmatpush2.msra.mxu0 0.0
    %280 = vmatprep.subr.mxu0 0.0
    %281 = vmatpush2.msra.mxu0 0.0
    %282 = vmatprep.subr.mxu0 0.0
    %283 = vmatpush2.msra.mxu0 0.0
    %284 = vmatprep.subr.mxu0 0.0
    %285 = vmatpush2.msra.mxu0 0.0
    %286 = vmatprep.subr.mxu0 0.0
    %287 = vmatpush2.msra.mxu0 0.0
    %288 = vmatprep.subr.mxu0 0.0
    %289 = vmatpush2.msra.mxu0 0.0
    %290 = vmatprep.subr.mxu0 0.0
    %291 = vmatpush2.msra.mxu0 0.0
    %292 = vmatprep.subr.mxu0 0.0
    %293 = vmatpush2.msra.mxu0 0.0
    %294 = vmatprep.subr.mxu0 0.0
    %295 = vmatpush2.msra.mxu0 0.0
    %296 = vmatprep.subr.mxu0 0.0
    %297 = vmatpush2.msra.mxu0 0.0
    %298 = vmatprep.subr.mxu0 0.0
    %299 = vmatpush2.msra.mxu0 0.0
    %300 = vmatprep.mubr.f32.mxu0 0.0
    %301 = vmatmul.mubr.f32.gmra.mxu0 %v234
    %v302 = vpop.f32.mrf.mxu0
    %v303 = vadd.f32 %v231, %v302
    %v304 = vpop.f32.mrf.mxu0
    %305 = vdwg.mxu0
    %v306 = vld [vmem:[%s5 + $0x2] sm:$0x1]
    %v307 = vld [vmem:[%s5 + $0x3] sm:$0x1]
    %v308 = vsel %vm27, %v40, 0.0
    %309 = vadd.xlane.f32.xlu0 %v308
    %v310 = vpop.xlane.xlu0 %309
    %v311 = vrcp.pop 16.0
    %v312 = vmul.f32 %v310, %v311
    %v313 = vsub.f32 %v40, %v312
    %v314 = vmul.f32 %v313, %v313
    %v315 = vsel %vm27, %v314, 0.0
    %316 = vadd.xlane.f32.xlu0 %v315
    %v317 = vpop.xlane.xlu0 %316
    %v318 = vmul.f32 %v317, %v311
    %v319 = vadd.f32 %v318, 1e-05
    %v320 = vrsqrt.pop %v319
    %v321 = vmul.f32 %v313, %v320
    %v322 = vlaneseq
    %v323 = vshrl.u32 %v322, 7
    %v324 = vsub.s32 0, %v323
    %v325 = vrot.slane %v306, %v324
    %v326 = vmul.f32 %v321, %v325
    %v327 = vlaneseq
    %v328 = vshrl.u32 %v327, 7
    %v329 = vsub.s32 0, %v328
    %v330 = vrot.slane %v307, %v329
    %v331 = vadd.f32 %v326, %v330
    %v332 = vxor.u32 %v331, 2147483648
    %v333 = vmul.f32 %v332, 1.442695
    %v334 = vpow.pop %v333
    %v335 = vadd.f32 %v334, 1.0
    %v336 = vrcp.pop %v335
    %v337 = vmul.f32 1.0, %v336
    %v338 = vmul.f32 %v331, %v337
    %v339 = vld [vmem:[%s4 + $0x30] sm:$0xff]
    %v340 = vld [vmem:[%s4 + $0x38] sm:$0xff]
    %v341 = vld [vmem:[%s5 + $0x4] sm:$0x1]
    %v342 = vlaneseq
    %v343 = vshrl.u32 %v342, 7
    %v344 = vsub.s32 0, %v343
    %v345 = vrot.slane %v341, %v344
    %v347 = vsel %vm27, %v338, 0
    %349 = vmatprep.subr.mxu0 0.0
    %350 = vmatpush1.msra.mxu0 0.0
    %351 = vmatprep.subr.mxu0 0.0
    %352 = vmatpush1.msra.mxu0 0.0
    %353 = vmatprep.subr.mxu0 0.0
    %354 = vmatpush1.msra.mxu0 0.0
    %355 = vmatprep.subr.mxu0 0.0
    %356 = vmatpush1.msra.mxu0 0.0
    %357 = vmatprep.subr.mxu0 0.0
    %358 = vmatpush1.msra.mxu0 0.0
    %359 = vmatprep.subr.mxu0 0.0
    %360 = vmatpush1.msra.mxu0 0.0
    %361 = vmatprep.subr.mxu0 0.0
    %362 = vmatpush1.msra.mxu0 0.0
    %363 = vmatprep.subr.mxu0 0.0
    %364 = vmatpush1.msra.mxu0 0.0
    %365 = vmatprep.subr.mxu0 0.0
    %366 = vmatpush1.msra.mxu0 0.0
    %367 = vmatprep.subr.mxu0 0.0
    %368 = vmatpush1.msra.mxu0 0.0
    %369 = vmatprep.subr.mxu0 0.0
    %370 = vmatpush1.msra.mxu0 0.0
    %371 = vmatprep.subr.mxu0 0.0
    %372 = vmatpush1.msra.mxu0 0.0
    %373 = vmatprep.subr.mxu0 0.0
    %374 = vmatpush1.msra.mxu0 0.0
    %375 = vmatprep.subr.mxu0 0.0
    %376 = vmatpush1.msra.mxu0 0.0
    %377 = vmatprep.subr.mxu0 0.0
    %378 = vmatpush1.msra.mxu0 %v340
    %379 = vmatprep.subr.mxu0 0.0
    %380 = vmatpush1.msra.mxu0 %v339
    %381 = vmatprep.subr.mxu0 0.0
    %382 = vmatpush2.msra.mxu0 0.0
    %383 = vmatprep.subr.mxu0 0.0
    %384 = vmatpush2.msra.mxu0 0.0
    %385 = vmatprep.subr.mxu0 0.0
    %386 = vmatpush2.msra.mxu0 0.0
    %387 = vmatprep.subr.mxu0 0.0
    %388 = vmatpush2.msra.mxu0 0.0
    %389 = vmatprep.subr.mxu0 0.0
    %390 = vmatpush2.msra.mxu0 0.0
    %391 = vmatprep.subr.mxu0 0.0
    %392 = vmatpush2.msra.mxu0 0.0
    %393 = vmatprep.subr.mxu0 0.0
    %394 = vmatpush2.msra.mxu0 0.0
    %395 = vmatprep.subr.mxu0 0.0
    %396 = vmatpush2.msra.mxu0 0.0
    %397 = vmatprep.subr.mxu0 0.0
    %398 = vmatpush2.msra.mxu0 0.0
    %399 = vmatprep.subr.mxu0 0.0
    %400 = vmatpush2.msra.mxu0 0.0
    %401 = vmatprep.subr.mxu0 0.0
    %402 = vmatpush2.msra.mxu0 0.0
    %403 = vmatprep.subr.mxu0 0.0
    %404 = vmatpush2.msra.mxu0 0.0
    %405 = vmatprep.subr.mxu0 0.0
    %406 = vmatpush2.msra.mxu0 0.0
    %407 = vmatprep.subr.mxu0 0.0
    %408 = vmatpush2.msra.mxu0 0.0
    %409 = vmatprep.subr.mxu0 0.0
    %410 = vmatpush2.msra.mxu0 0.0
    %411 = vmatprep.subr.mxu0 0.0
    %412 = vmatpush2.msra.mxu0 0.0
    %413 = vmatprep.mubr.f32.mxu0 0.0
    %414 = vmatmul.mubr.f32.gmra.mxu0 %v347
    %v415 = vpop.f32.mrf.mxu0
    %v416 = vadd.f32 %v345, %v415
    %v417 = vpop.f32.mrf.mxu0
    %418 = vdwg.mxu0
    %v419 = vxor.u32 %v303, 2147483648
    %v420 = vmul.f32 %v419, 1.442695
    %v421 = vpow.pop %v420
    %v422 = vadd.f32 %v421, 1.0
    %v423 = vrcp.pop %v422
    %v424 = vmul.f32 1.0, %v423
    %v425 = vmul.f32 %v303, %v424
    %v426 = vxor.u32 %v416, 2147483648
    %v427 = vmul.f32 %v426, 1.442695
    %v428 = vpow.pop %v427
    %v429 = vadd.f32 %v428, 1.0
    %v430 = vrcp.pop %v429
    %v431 = vmul.f32 1.0, %v430
    %v432 = vmul.f32 %v416, %v431
    %434 = vrot.lane.b32.xlu0 %v432, 32
    %v435 = vpop.permute.xlu0 %434
    %v437 = vsel %vm232, %v425, %v435
    %v438 = vld [vmem:[%s4 + $0x40] sm:$0xff]
    %v439 = vld [vmem:[%s4 + $0x48] sm:$0xff]
    %v440 = vld [vmem:[%s4 + $0x50] sm:$0xff]
    %v441 = vld [vmem:[%s4 + $0x58] sm:$0xff]
    %v442 = vld [vmem:[%s4 + $0x60] sm:$0xff]
    %v443 = vld [vmem:[%s4 + $0x68] sm:$0xff]
    %v444 = vld [vmem:[%s4 + $0x70] sm:$0xff]
    %v445 = vld [vmem:[%s4 + $0x78] sm:$0xff]
    %vm446 = vcmask 523264
    %v448 = vsel %vm446, %v437, 0
    %450 = vmatprep.subr.mxu0 0.0
    %451 = vmatpush1.msra.mxu0 0.0
    %452 = vmatprep.subr.mxu0 0.0
    %453 = vmatpush1.msra.mxu0 0.0
    %454 = vmatprep.subr.mxu0 0.0
    %455 = vmatpush1.msra.mxu0 0.0
    %456 = vmatprep.subr.mxu0 0.0
    %457 = vmatpush1.msra.mxu0 0.0
    %458 = vmatprep.subr.mxu0 0.0
    %459 = vmatpush1.msra.mxu0 0.0
    %460 = vmatprep.subr.mxu0 0.0
    %461 = vmatpush1.msra.mxu0 0.0
    %462 = vmatprep.subr.mxu0 0.0
    %463 = vmatpush1.msra.mxu0 0.0
    %464 = vmatprep.subr.mxu0 0.0
    %465 = vmatpush1.msra.mxu0 0.0
    %466 = vmatprep.subr.mxu0 0.0
    %467 = vmatpush1.msra.mxu0 %v445
    %468 = vmatprep.subr.mxu0 0.0
    %469 = vmatpush1.msra.mxu0 %v444
    %470 = vmatprep.subr.mxu0 0.0
    %471 = vmatpush1.msra.mxu0 %v443
    %472 = vmatprep.subr.mxu0 0.0
    %473 = vmatpush1.msra.mxu0 %v442
    %474 = vmatprep.subr.mxu0 0.0
    %475 = vmatpush1.msra.mxu0 %v441
    %476 = vmatprep.subr.mxu0 0.0
    %477 = vmatpush1.msra.mxu0 %v440
    %478 = vmatprep.subr.mxu0 0.0
    %479 = vmatpush1.msra.mxu0 %v439
    %480 = vmatprep.subr.mxu0 0.0
    %481 = vmatpush1.msra.mxu0 %v438
    %482 = vmatprep.subr.mxu0 0.0
    %483 = vmatpush2.msra.mxu0 0.0
    %484 = vmatprep.subr.mxu0 0.0
    %485 = vmatpush2.msra.mxu0 0.0
    %486 = vmatprep.subr.mxu0 0.0
    %487 = vmatpush2.msra.mxu0 0.0
    %488 = vmatprep.subr.mxu0 0.0
    %489 = vmatpush2.msra.mxu0 0.0
    %490 = vmatprep.subr.mxu0 0.0
    %491 = vmatpush2.msra.mxu0 0.0
    %492 = vmatprep.subr.mxu0 0.0
    %493 = vmatpush2.msra.mxu0 0.0
    %494 = vmatprep.subr.mxu0 0.0
    %495 = vmatpush2.msra.mxu0 0.0
    %496 = vmatprep.subr.mxu0 0.0
    %497 = vmatpush2.msra.mxu0 0.0
    %498 = vmatprep.subr.mxu0 0.0
    %499 = vmatpush2.msra.mxu0 0.0
    %500 = vmatprep.subr.mxu0 0.0
    %501 = vmatpush2.msra.mxu0 0.0
    %502 = vmatprep.subr.mxu0 0.0
    %503 = vmatpush2.msra.mxu0 0.0
    %504 = vmatprep.subr.mxu0 0.0
    %505 = vmatpush2.msra.mxu0 0.0
    %506 = vmatprep.subr.mxu0 0.0
    %507 = vmatpush2.msra.mxu0 0.0
    %508 = vmatprep.subr.mxu0 0.0
    %509 = vmatpush2.msra.mxu0 0.0
    %510 = vmatprep.subr.mxu0 0.0
    %511 = vmatpush2.msra.mxu0 0.0
    %512 = vmatprep.subr.mxu0 0.0
    %513 = vmatpush2.msra.mxu0 0.0
    %514 = vmatprep.mubr.f32.mxu0 0.0
    %515 = vmatmul.mubr.f32.gmra.mxu0 %v448
    %v516 = vpop.f32.mrf.mxu0
    %v517 = vadd.f32 0.0, %v516
    %v518 = vpop.f32.mrf.mxu0
    %519 = vdwg.mxu0
    %v520 = vld [vmem:[%s4 + $0x80] sm:$0xff]
    %v521 = vld [vmem:[%s4 + $0x88] sm:$0xff]
    %v522 = vld [vmem:[%s4 + $0x90] sm:$0xff]
    %v523 = vld [vmem:[%s4 + $0x98] sm:$0xff]
    %v524 = vld [vmem:[%s4 + $0xa0] sm:$0xff]
    %v525 = vld [vmem:[%s4 + $0xa8] sm:$0xff]
    %v526 = vld [vmem:[%s4 + $0xb0] sm:$0xff]
    %v527 = vld [vmem:[%s4 + $0xb8] sm:$0xff]
    %528 = vmatprep.subr.mxu0 0.0
    %529 = vmatpush1.msra.mxu0 0.0
    %530 = vmatprep.subr.mxu0 0.0
    %531 = vmatpush1.msra.mxu0 0.0
    %532 = vmatprep.subr.mxu0 0.0
    %533 = vmatpush1.msra.mxu0 0.0
    %534 = vmatprep.subr.mxu0 0.0
    %535 = vmatpush1.msra.mxu0 0.0
    %536 = vmatprep.subr.mxu0 0.0
    %537 = vmatpush1.msra.mxu0 0.0
    %538 = vmatprep.subr.mxu0 0.0
    %539 = vmatpush1.msra.mxu0 0.0
    %540 = vmatprep.subr.mxu0 0.0
    %541 = vmatpush1.msra.mxu0 0.0
    %542 = vmatprep.subr.mxu0 0.0
    %543 = vmatpush1.msra.mxu0 0.0
    %544 = vmatprep.subr.mxu0 0.0
    %545 = vmatpush1.msra.mxu0 %v527
    %546 = vmatprep.subr.mxu0 0.0
    %547 = vmatpush1.msra.mxu0 %v526
    %548 = vmatprep.subr.mxu0 0.0
    %549 = vmatpush1.msra.mxu0 %v525
    %550 = vmatprep.subr.mxu0 0.0
    %551 = vmatpush1.msra.mxu0 %v524
    %552 = vmatprep.subr.mxu0 0.0
    %553 = vmatpush1.msra.mxu0 %v523
    %554 = vmatprep.subr.mxu0 0.0
    %555 = vmatpush1.msra.mxu0 %v522
    %556 = vmatprep.subr.mxu0 0.0
    %557 = vmatpush1.msra.mxu0 %v521
    %558 = vmatprep.subr.mxu0 0.0
    %559 = vmatpush1.msra.mxu0 %v520
    %560 = vmatprep.subr.mxu0 0.0
    %561 = vmatpush2.msra.mxu0 0.0
    %562 = vmatprep.subr.mxu0 0.0
    %563 = vmatpush2.msra.mxu0 0.0
    %564 = vmatprep.subr.mxu0 0.0
    %565 = vmatpush2.msra.mxu0 0.0
    %566 = vmatprep.subr.mxu0 0.0
    %567 = vmatpush2.msra.mxu0 0.0
    %568 = vmatprep.subr.mxu0 0.0
    %569 = vmatpush2.msra.mxu0 0.0
    %570 = vmatprep.subr.mxu0 0.0
    %571 = vmatpush2.msra.mxu0 0.0
    %572 = vmatprep.subr.mxu0 0.0
    %573 = vmatpush2.msra.mxu0 0.0
    %574 = vmatprep.subr.mxu0 0.0
    %575 = vmatpush2.msra.mxu0 0.0
    %576 = vmatprep.subr.mxu0 0.0
    %577 = vmatpush2.msra.mxu0 0.0
    %578 = vmatprep.subr.mxu0 0.0
    %579 = vmatpush2.msra.mxu0 0.0
    %580 = vmatprep.subr.mxu0 0.0
    %581 = vmatpush2.msra.mxu0 0.0
    %582 = vmatprep.subr.mxu0 0.0
    %583 = vmatpush2.msra.mxu0 0.0
    %584 = vmatprep.subr.mxu0 0.0
    %585 = vmatpush2.msra.mxu0 0.0
    %586 = vmatprep.subr.mxu0 0.0
    %587 = vmatpush2.msra.mxu0 0.0
    %588 = vmatprep.subr.mxu0 0.0
    %589 = vmatpush2.msra.mxu0 0.0
    %590 = vmatprep.subr.mxu0 0.0
    %591 = vmatpush2.msra.mxu0 0.0
    %592 = vmatprep.mubr.f32.mxu0 0.0
    %593 = vmatmul.mubr.f32.gmra.mxu0 %v448
    %v594 = vpop.f32.mrf.mxu0
    %v595 = vadd.f32 0.0, %v594
    %v596 = vpop.f32.mrf.mxu0
    %597 = vdwg.mxu0
    %v598 = vld [vmem:[%s5 + $0x5] sm:$0x1]
    %v599 = vld [vmem:[%s5 + $0x6] sm:$0x1]
    %v600 = vsel %vm27, %v24, 0.0
    %601 = vadd.xlane.f32.xlu0 %v600
    %v602 = vpop.xlane.xlu0 %601
    %v603 = vmul.f32 %v602, %v311
    %v604 = vsub.f32 %v24, %v603
    %v605 = vmul.f32 %v604, %v604
    %v606 = vsel %vm27, %v605, 0.0
    %607 = vadd.xlane.f32.xlu0 %v606
    %v608 = vpop.xlane.xlu0 %607
    %v609 = vmul.f32 %v608, %v311
    %v610 = vadd.f32 %v609, 1e-05
    %v611 = vrsqrt.pop %v610
    %v612 = vmul.f32 %v604, %v611
    %v613 = vlaneseq
    %v614 = vshrl.u32 %v613, 7
    %v615 = vsub.s32 0, %v614
    %v616 = vrot.slane %v598, %v615
    %v617 = vmul.f32 %v612, %v616
    %v618 = vlaneseq
    %v619 = vshrl.u32 %v618, 7
    %v620 = vsub.s32 0, %v619
    %v621 = vrot.slane %v599, %v620
    %v622 = vadd.f32 %v617, %v621
    %v623 = vxor.u32 %v622, 2147483648
    %v624 = vmul.f32 %v623, 1.442695
    %v625 = vpow.pop %v624
    %v626 = vadd.f32 %v625, 1.0
    %v627 = vrcp.pop %v626
    %v628 = vmul.f32 1.0, %v627
    %v629 = vmul.f32 %v622, %v628
    %v630 = vld [vmem:[%s4 + $0xc0] sm:$0xff]
    %v631 = vld [vmem:[%s4 + $0xc8] sm:$0xff]
    %v632 = vld [vmem:[%s5 + $0x7] sm:$0x1]
    %v633 = vlaneseq
    %v634 = vshrl.u32 %v633, 7
    %v635 = vsub.s32 0, %v634
    %v636 = vrot.slane %v632, %v635
    %v638 = vsel %vm27, %v629, 0
    %640 = vmatprep.subr.mxu0 0.0
    %641 = vmatpush1.msra.mxu0 0.0
    %642 = vmatprep.subr.mxu0 0.0
    %643 = vmatpush1.msra.mxu0 0.0
    %644 = vmatprep.subr.mxu0 0.0
    %645 = vmatpush1.msra.mxu0 0.0
    %646 = vmatprep.subr.mxu0 0.0
    %647 = vmatpush1.msra.mxu0 0.0
    %648 = vmatprep.subr.mxu0 0.0
    %649 = vmatpush1.msra.mxu0 0.0
    %650 = vmatprep.subr.mxu0 0.0
    %651 = vmatpush1.msra.mxu0 0.0
    %652 = vmatprep.subr.mxu0 0.0
    %653 = vmatpush1.msra.mxu0 0.0
    %654 = vmatprep.subr.mxu0 0.0
    %655 = vmatpush1.msra.mxu0 0.0
    %656 = vmatprep.subr.mxu0 0.0
    %657 = vmatpush1.msra.mxu0 0.0
    %658 = vmatprep.subr.mxu0 0.0
    %659 = vmatpush1.msra.mxu0 0.0
    %660 = vmatprep.subr.mxu0 0.0
    %661 = vmatpush1.msra.mxu0 0.0
    %662 = vmatprep.subr.mxu0 0.0
    %663 = vmatpush1.msra.mxu0 0.0
    %664 = vmatprep.subr.mxu0 0.0
    %665 = vmatpush1.msra.mxu0 0.0
    %666 = vmatprep.subr.mxu0 0.0
    %667 = vmatpush1.msra.mxu0 0.0
    %668 = vmatprep.subr.mxu0 0.0
    %669 = vmatpush1.msra.mxu0 %v631
    %670 = vmatprep.subr.mxu0 0.0
    %671 = vmatpush1.msra.mxu0 %v630
    %672 = vmatprep.subr.mxu0 0.0
    %673 = vmatpush2.msra.mxu0 0.0
    %674 = vmatprep.subr.mxu0 0.0
    %675 = vmatpush2.msra.mxu0 0.0
    %676 = vmatprep.subr.mxu0 0.0
    %677 = vmatpush2.msra.mxu0 0.0
    %678 = vmatprep.subr.mxu0 0.0
    %679 = vmatpush2.msra.mxu0 0.0
    %680 = vmatprep.subr.mxu0 0.0
    %681 = vmatpush2.msra.mxu0 0.0
    %682 = vmatprep.subr.mxu0 0.0
    %683 = vmatpush2.msra.mxu0 0.0
    %684 = vmatprep.subr.mxu0 0.0
    %685 = vmatpush2.msra.mxu0 0.0
    %686 = vmatprep.subr.mxu0 0.0
    %687 = vmatpush2.msra.mxu0 0.0
    %688 = vmatprep.subr.mxu0 0.0
    %689 = vmatpush2.msra.mxu0 0.0
    %690 = vmatprep.subr.mxu0 0.0
    %691 = vmatpush2.msra.mxu0 0.0
    %692 = vmatprep.subr.mxu0 0.0
    %693 = vmatpush2.msra.mxu0 0.0
    %694 = vmatprep.subr.mxu0 0.0
    %695 = vmatpush2.msra.mxu0 0.0
    %696 = vmatprep.subr.mxu0 0.0
    %697 = vmatpush2.msra.mxu0 0.0
    %698 = vmatprep.subr.mxu0 0.0
    %699 = vmatpush2.msra.mxu0 0.0
    %700 = vmatprep.subr.mxu0 0.0
    %701 = vmatpush2.msra.mxu0 0.0
    %702 = vmatprep.subr.mxu0 0.0
    %703 = vmatpush2.msra.mxu0 0.0
    %704 = vmatprep.mubr.f32.mxu0 0.0
    %705 = vmatmul.mubr.f32.gmra.mxu0 %v638
    %v706 = vpop.f32.mrf.mxu0
    %v707 = vadd.f32 %v636, %v706
    %v708 = vpop.f32.mrf.mxu0
    %709 = vdwg.mxu0
    %v710 = vadd.f32 %v707, %v517
    %v711 = vld [vmem:[%s5 + $0x8] sm:$0x1]
    %v712 = vld [vmem:[%s5 + $0x9] sm:$0x1]
    %v713 = vsel %vm232, %v710, 0.0
    %714 = vadd.xlane.f32.xlu0 %v713
    %v715 = vpop.xlane.xlu0 %714
    %v716 = vrcp.pop 32.0
    %v717 = vmul.f32 %v715, %v716
    %v718 = vsub.f32 %v710, %v717
    %v719 = vmul.f32 %v718, %v718
    %v720 = vsel %vm232, %v719, 0.0
    %721 = vadd.xlane.f32.xlu0 %v720
    %v722 = vpop.xlane.xlu0 %721
    %v723 = vmul.f32 %v722, %v716
    %v724 = vadd.f32 %v723, 1e-05
    %v725 = vrsqrt.pop %v724
    %v726 = vmul.f32 %v718, %v725
    %v727 = vlaneseq
    %v728 = vshrl.u32 %v727, 7
    %v729 = vsub.s32 0, %v728
    %v730 = vrot.slane %v711, %v729
    %v731 = vmul.f32 %v726, %v730
    %v732 = vlaneseq
    %v733 = vshrl.u32 %v732, 7
    %v734 = vsub.s32 0, %v733
    %v735 = vrot.slane %v712, %v734
    %v736 = vadd.f32 %v731, %v735
    %v737 = vxor.u32 %v736, 2147483648
    %v738 = vmul.f32 %v737, 1.442695
    %v739 = vpow.pop %v738
    %v740 = vadd.f32 %v739, 1.0
    %v741 = vrcp.pop %v740
    %v742 = vmul.f32 1.0, %v741
    %v743 = vmul.f32 %v736, %v742
    %745 = vrot.lane.b32.xlu0 %v24, 32
    %v746 = vpop.permute.xlu0 %745
    %v748 = vsel %vm232, %v743, %v746
    %v749 = vld [vmem:[%s4 + $0xd0] sm:$0xff]
    %v750 = vld [vmem:[%s4 + $0xd8] sm:$0xff]
    %v751 = vld [vmem:[%s4 + $0xe0] sm:$0xff]
    %v752 = vld [vmem:[%s4 + $0xe8] sm:$0xff]
    %v753 = vld [vmem:[%s4 + $0xf0] sm:$0xff]
    %v754 = vld [vmem:[%s4 + $0xf8] sm:$0xff]
    %v755 = vld [vmem:[%s5 + $0xa] sm:$0x1]
    %v756 = vlaneseq
    %v757 = vshrl.u32 %v756, 7
    %v758 = vsub.s32 0, %v757
    %v759 = vrot.slane %v755, %v758
    %vm760 = vcmask 392192
    %v762 = vsel %vm760, %v748, 0
    %764 = vmatprep.subr.mxu0 0.0
    %765 = vmatpush1.msra.mxu0 0.0
    %766 = vmatprep.subr.mxu0 0.0
    %767 = vmatpush1.msra.mxu0 0.0
    %768 = vmatprep.subr.mxu0 0.0
    %769 = vmatpush1.msra.mxu0 0.0
    %770 = vmatprep.subr.mxu0 0.0
    %771 = vmatpush1.msra.mxu0 0.0
    %772 = vmatprep.subr.mxu0 0.0
    %773 = vmatpush1.msra.mxu0 0.0
    %774 = vmatprep.subr.mxu0 0.0
    %775 = vmatpush1.msra.mxu0 0.0
    %776 = vmatprep.subr.mxu0 0.0
    %777 = vmatpush1.msra.mxu0 0.0
    %778 = vmatprep.subr.mxu0 0.0
    %779 = vmatpush1.msra.mxu0 0.0
    %780 = vmatprep.subr.mxu0 0.0
    %781 = vmatpush1.msra.mxu0 0.0
    %782 = vmatprep.subr.mxu0 0.0
    %783 = vmatpush1.msra.mxu0 0.0
    %784 = vmatprep.subr.mxu0 0.0
    %785 = vmatpush1.msra.mxu0 %v754
    %786 = vmatprep.subr.mxu0 0.0
    %787 = vmatpush1.msra.mxu0 %v753
    %788 = vmatprep.subr.mxu0 0.0
    %789 = vmatpush1.msra.mxu0 %v752
    %790 = vmatprep.subr.mxu0 0.0
    %791 = vmatpush1.msra.mxu0 %v751
    %792 = vmatprep.subr.mxu0 0.0
    %793 = vmatpush1.msra.mxu0 %v750
    %794 = vmatprep.subr.mxu0 0.0
    %795 = vmatpush1.msra.mxu0 %v749
    %796 = vmatprep.subr.mxu0 0.0
    %797 = vmatpush2.msra.mxu0 0.0
    %798 = vmatprep.subr.mxu0 0.0
    %799 = vmatpush2.msra.mxu0 0.0
    %800 = vmatprep.subr.mxu0 0.0
    %801 = vmatpush2.msra.mxu0 0.0
    %802 = vmatprep.subr.mxu0 0.0
    %803 = vmatpush2.msra.mxu0 0.0
    %804 = vmatprep.subr.mxu0 0.0
    %805 = vmatpush2.msra.mxu0 0.0
    %806 = vmatprep.subr.mxu0 0.0
    %807 = vmatpush2.msra.mxu0 0.0
    %808 = vmatprep.subr.mxu0 0.0
    %809 = vmatpush2.msra.mxu0 0.0
    %810 = vmatprep.subr.mxu0 0.0
    %811 = vmatpush2.msra.mxu0 0.0
    %812 = vmatprep.subr.mxu0 0.0
    %813 = vmatpush2.msra.mxu0 0.0
    %814 = vmatprep.subr.mxu0 0.0
    %815 = vmatpush2.msra.mxu0 0.0
    %816 = vmatprep.subr.mxu0 0.0
    %817 = vmatpush2.msra.mxu0 0.0
    %818 = vmatprep.subr.mxu0 0.0
    %819 = vmatpush2.msra.mxu0 0.0
    %820 = vmatprep.subr.mxu0 0.0
    %821 = vmatpush2.msra.mxu0 0.0
    %822 = vmatprep.subr.mxu0 0.0
    %823 = vmatpush2.msra.mxu0 0.0
    %824 = vmatprep.subr.mxu0 0.0
    %825 = vmatpush2.msra.mxu0 0.0
    %826 = vmatprep.subr.mxu0 0.0
    %827 = vmatpush2.msra.mxu0 0.0
    %828 = vmatprep.mubr.f32.mxu0 0.0
    %829 = vmatmul.mubr.f32.gmra.mxu0 %v762
    %v830 = vpop.f32.mrf.mxu0
    %v831 = vadd.f32 %v759, %v830
    %v832 = vpop.f32.mrf.mxu0
    %833 = vdwg.mxu0
    %v834 = vld [vmem:[%s5 + $0xb] sm:$0x1]
    %v835 = vld [vmem:[%s5 + $0xc] sm:$0x1]
    %v836 = vsel %vm27, %v831, 0.0
    %837 = vadd.xlane.f32.xlu0 %v836
    %v838 = vpop.xlane.xlu0 %837
    %v839 = vmul.f32 %v838, %v311
    %v840 = vsub.f32 %v831, %v839
    %v841 = vmul.f32 %v840, %v840
    %v842 = vsel %vm27, %v841, 0.0
    %843 = vadd.xlane.f32.xlu0 %v842
    %v844 = vpop.xlane.xlu0 %843
    %v845 = vmul.f32 %v844, %v311
    %v846 = vadd.f32 %v845, 1e-05
    %v847 = vrsqrt.pop %v846
    %v848 = vmul.f32 %v840, %v847
    %v849 = vlaneseq
    %v850 = vshrl.u32 %v849, 7
    %v851 = vsub.s32 0, %v850
    %v852 = vrot.slane %v834, %v851
    %v853 = vmul.f32 %v848, %v852
    %v854 = vlaneseq
    %v855 = vshrl.u32 %v854, 7
    %v856 = vsub.s32 0, %v855
    %v857 = vrot.slane %v835, %v856
    %v858 = vadd.f32 %v853, %v857
    %v859 = vxor.u32 %v858, 2147483648
    %v860 = vmul.f32 %v859, 1.442695
    %v861 = vpow.pop %v860
    %v862 = vadd.f32 %v861, 1.0
    %v863 = vrcp.pop %v862
    %v864 = vmul.f32 1.0, %v863
    %v865 = vmul.f32 %v858, %v864
    %v866 = vld [vmem:[%s4 + $0x100] sm:$0xff]
    %v867 = vld [vmem:[%s4 + $0x108] sm:$0xff]
    %v868 = vld [vmem:[%s5 + $0xd] sm:$0x1]
    %v869 = vlaneseq
    %v870 = vshrl.u32 %v869, 7
    %v871 = vsub.s32 0, %v870
    %v872 = vrot.slane %v868, %v871
    %v874 = vsel %vm27, %v865, 0
    %876 = vmatprep.subr.mxu0 0.0
    %877 = vmatpush1.msra.mxu0 0.0
    %878 = vmatprep.subr.mxu0 0.0
    %879 = vmatpush1.msra.mxu0 0.0
    %880 = vmatprep.subr.mxu0 0.0
    %881 = vmatpush1.msra.mxu0 0.0
    %882 = vmatprep.subr.mxu0 0.0
    %883 = vmatpush1.msra.mxu0 0.0
    %884 = vmatprep.subr.mxu0 0.0
    %885 = vmatpush1.msra.mxu0 0.0
    %886 = vmatprep.subr.mxu0 0.0
    %887 = vmatpush1.msra.mxu0 0.0
    %888 = vmatprep.subr.mxu0 0.0
    %889 = vmatpush1.msra.mxu0 0.0
    %890 = vmatprep.subr.mxu0 0.0
    %891 = vmatpush1.msra.mxu0 0.0
    %892 = vmatprep.subr.mxu0 0.0
    %893 = vmatpush1.msra.mxu0 0.0
    %894 = vmatprep.subr.mxu0 0.0
    %895 = vmatpush1.msra.mxu0 0.0
    %896 = vmatprep.subr.mxu0 0.0
    %897 = vmatpush1.msra.mxu0 0.0
    %898 = vmatprep.subr.mxu0 0.0
    %899 = vmatpush1.msra.mxu0 0.0
    %900 = vmatprep.subr.mxu0 0.0
    %901 = vmatpush1.msra.mxu0 0.0
    %902 = vmatprep.subr.mxu0 0.0
    %903 = vmatpush1.msra.mxu0 0.0
    %904 = vmatprep.subr.mxu0 0.0
    %905 = vmatpush1.msra.mxu0 %v867
    %906 = vmatprep.subr.mxu0 0.0
    %907 = vmatpush1.msra.mxu0 %v866
    %908 = vmatprep.subr.mxu0 0.0
    %909 = vmatpush2.msra.mxu0 0.0
    %910 = vmatprep.subr.mxu0 0.0
    %911 = vmatpush2.msra.mxu0 0.0
    %912 = vmatprep.subr.mxu0 0.0
    %913 = vmatpush2.msra.mxu0 0.0
    %914 = vmatprep.subr.mxu0 0.0
    %915 = vmatpush2.msra.mxu0 0.0
    %916 = vmatprep.subr.mxu0 0.0
    %917 = vmatpush2.msra.mxu0 0.0
    %918 = vmatprep.subr.mxu0 0.0
    %919 = vmatpush2.msra.mxu0 0.0
    %920 = vmatprep.subr.mxu0 0.0
    %921 = vmatpush2.msra.mxu0 0.0
    %922 = vmatprep.subr.mxu0 0.0
    %923 = vmatpush2.msra.mxu0 0.0
    %924 = vmatprep.subr.mxu0 0.0
    %925 = vmatpush2.msra.mxu0 0.0
    %926 = vmatprep.subr.mxu0 0.0
    %927 = vmatpush2.msra.mxu0 0.0
    %928 = vmatprep.subr.mxu0 0.0
    %929 = vmatpush2.msra.mxu0 0.0
    %930 = vmatprep.subr.mxu0 0.0
    %931 = vmatpush2.msra.mxu0 0.0
    %932 = vmatprep.subr.mxu0 0.0
    %933 = vmatpush2.msra.mxu0 0.0
    %934 = vmatprep.subr.mxu0 0.0
    %935 = vmatpush2.msra.mxu0 0.0
    %936 = vmatprep.subr.mxu0 0.0
    %937 = vmatpush2.msra.mxu0 0.0
    %938 = vmatprep.subr.mxu0 0.0
    %939 = vmatpush2.msra.mxu0 0.0
    %940 = vmatprep.mubr.f32.mxu0 0.0
    %941 = vmatmul.mubr.f32.gmra.mxu0 %v874
    %v942 = vpop.f32.mrf.mxu0
    %v943 = vadd.f32 %v872, %v942
    %v944 = vpop.f32.mrf.mxu0
    %945 = vdwg.mxu0
    %v946 = vadd.f32 %v943, %v595
    %v947 = vld [vmem:[%s5 + $0xe] sm:$0x1]
    %v948 = vld [vmem:[%s5 + $0xf] sm:$0x1]
    %v949 = vsel %vm232, %v946, 0.0
    %950 = vadd.xlane.f32.xlu0 %v949
    %v951 = vpop.xlane.xlu0 %950
    %v952 = vmul.f32 %v951, %v716
    %v953 = vsub.f32 %v946, %v952
    %v954 = vmul.f32 %v953, %v953
    %v955 = vsel %vm232, %v954, 0.0
    %956 = vadd.xlane.f32.xlu0 %v955
    %v957 = vpop.xlane.xlu0 %956
    %v958 = vmul.f32 %v957, %v716
    %v959 = vadd.f32 %v958, 1e-05
    %v960 = vrsqrt.pop %v959
    %v961 = vmul.f32 %v953, %v960
    %v962 = vlaneseq
    %v963 = vshrl.u32 %v962, 7
    %v964 = vsub.s32 0, %v963
    %v965 = vrot.slane %v947, %v964
    %v966 = vmul.f32 %v961, %v965
    %v967 = vlaneseq
    %v968 = vshrl.u32 %v967, 7
    %v969 = vsub.s32 0, %v968
    %v970 = vrot.slane %v948, %v969
    %v971 = vadd.f32 %v966, %v970
    %v972 = vxor.u32 %v971, 2147483648
    %v973 = vmul.f32 %v972, 1.442695
    %v974 = vpow.pop %v973
    %v975 = vadd.f32 %v974, 1.0
    %v976 = vrcp.pop %v975
    %v977 = vmul.f32 1.0, %v976
    %v978 = vmul.f32 %v971, %v977
    %980 = vrot.lane.b32.xlu0 %v831, 32
    %v981 = vpop.permute.xlu0 %980
    %v983 = vsel %vm232, %v978, %v981
    %v984 = vld [vmem:[%s4 + $0x110] sm:$0xff]
    %v985 = vld [vmem:[%s4 + $0x118] sm:$0xff]
    %v986 = vld [vmem:[%s4 + $0x120] sm:$0xff]
    %v987 = vld [vmem:[%s4 + $0x128] sm:$0xff]
    %v988 = vld [vmem:[%s4 + $0x130] sm:$0xff]
    %v989 = vld [vmem:[%s4 + $0x138] sm:$0xff]
    %v990 = vld [vmem:[%s5 + $0x10] sm:$0x1]
    %v991 = vlaneseq
    %v992 = vshrl.u32 %v991, 7
    %v993 = vsub.s32 0, %v992
    %v994 = vrot.slane %v990, %v993
    %v996 = vsel %vm760, %v983, 0
    %998 = vmatprep.subr.mxu0 0.0
    %999 = vmatpush1.msra.mxu0 0.0
    %1000 = vmatprep.subr.mxu0 0.0
    %1001 = vmatpush1.msra.mxu0 0.0
    %1002 = vmatprep.subr.mxu0 0.0
    %1003 = vmatpush1.msra.mxu0 0.0
    %1004 = vmatprep.subr.mxu0 0.0
    %1005 = vmatpush1.msra.mxu0 0.0
    %1006 = vmatprep.subr.mxu0 0.0
    %1007 = vmatpush1.msra.mxu0 0.0
    %1008 = vmatprep.subr.mxu0 0.0
    %1009 = vmatpush1.msra.mxu0 0.0
    %1010 = vmatprep.subr.mxu0 0.0
    %1011 = vmatpush1.msra.mxu0 0.0
    %1012 = vmatprep.subr.mxu0 0.0
    %1013 = vmatpush1.msra.mxu0 0.0
    %1014 = vmatprep.subr.mxu0 0.0
    %1015 = vmatpush1.msra.mxu0 0.0
    %1016 = vmatprep.subr.mxu0 0.0
    %1017 = vmatpush1.msra.mxu0 0.0
    %1018 = vmatprep.subr.mxu0 0.0
    %1019 = vmatpush1.msra.mxu0 %v989
    %1020 = vmatprep.subr.mxu0 0.0
    %1021 = vmatpush1.msra.mxu0 %v988
    %1022 = vmatprep.subr.mxu0 0.0
    %1023 = vmatpush1.msra.mxu0 %v987
    %1024 = vmatprep.subr.mxu0 0.0
    %1025 = vmatpush1.msra.mxu0 %v986
    %1026 = vmatprep.subr.mxu0 0.0
    %1027 = vmatpush1.msra.mxu0 %v985
    %1028 = vmatprep.subr.mxu0 0.0
    %1029 = vmatpush1.msra.mxu0 %v984
    %1030 = vmatprep.subr.mxu0 0.0
    %1031 = vmatpush2.msra.mxu0 0.0
    %1032 = vmatprep.subr.mxu0 0.0
    %1033 = vmatpush2.msra.mxu0 0.0
    %1034 = vmatprep.subr.mxu0 0.0
    %1035 = vmatpush2.msra.mxu0 0.0
    %1036 = vmatprep.subr.mxu0 0.0
    %1037 = vmatpush2.msra.mxu0 0.0
    %1038 = vmatprep.subr.mxu0 0.0
    %1039 = vmatpush2.msra.mxu0 0.0
    %1040 = vmatprep.subr.mxu0 0.0
    %1041 = vmatpush2.msra.mxu0 0.0
    %1042 = vmatprep.subr.mxu0 0.0
    %1043 = vmatpush2.msra.mxu0 0.0
    %1044 = vmatprep.subr.mxu0 0.0
    %1045 = vmatpush2.msra.mxu0 0.0
    %1046 = vmatprep.subr.mxu0 0.0
    %1047 = vmatpush2.msra.mxu0 0.0
    %1048 = vmatprep.subr.mxu0 0.0
    %1049 = vmatpush2.msra.mxu0 0.0
    %1050 = vmatprep.subr.mxu0 0.0
    %1051 = vmatpush2.msra.mxu0 0.0
    %1052 = vmatprep.subr.mxu0 0.0
    %1053 = vmatpush2.msra.mxu0 0.0
    %1054 = vmatprep.subr.mxu0 0.0
    %1055 = vmatpush2.msra.mxu0 0.0
    %1056 = vmatprep.subr.mxu0 0.0
    %1057 = vmatpush2.msra.mxu0 0.0
    %1058 = vmatprep.subr.mxu0 0.0
    %1059 = vmatpush2.msra.mxu0 0.0
    %1060 = vmatprep.subr.mxu0 0.0
    %1061 = vmatpush2.msra.mxu0 0.0
    %1062 = vmatprep.mubr.f32.mxu0 0.0
    %1063 = vmatmul.mubr.f32.gmra.mxu0 %v996
    %v1064 = vpop.f32.mrf.mxu0
    %v1065 = vadd.f32 %v994, %v1064
    %v1066 = vpop.f32.mrf.mxu0
    %1067 = vdwg.mxu0
    %1068 = vst.msk [vmem:[#allocation2] sm:$0xff] %vm27, %v1065
    // Predicated region
    $region26: #{tpu_custom_call.1} parent=1 // pred_check
      _
    $region27: #{tpu_custom_call.1} parent=1 // pred_check_branch
      %1070 = sbr.rel (0) target = $region29
    $region28: #{tpu_custom_call.1} parent=1 // pred_region
      %s1072 = ssub.s32 128, 128
      %1073 = vsyncadd [#allocation3], %s1072
      %s1075 = sshll.u32 [#allocation2], 4
      %s1076 = int_to_ptr.vmem [resolvable:$true] %s1075
      %1078 = dma.vmem_to_hbm [thread:$0]  %s1076, 128, %s6, [#allocation3]
    $region29: #{tpu_custom_call.1} parent=1 // pred_fallthru
      _
    // Predicated region
    $region30: #{tpu_custom_call.1} parent=1 // pred_check
      _
    $region31: #{tpu_custom_call.1} parent=1 // pred_check_branch
      %1080 = sbr.rel (0) target = $region33
    $region32: #{tpu_custom_call.1} parent=1 // pred_region
      %1081 = dma.done [#allocation3], 128
    $region33: #{tpu_custom_call.1} parent=1 // pred_fallthru
      _
    %1082 = vsyncpa [#allocation3], 1

</llo_original>
